<compile_context>
chip_gen: v5e
topology: v5e:2x2
jax: 0.10.0
libtpu: 0.0.40
codegen_flags: <defaults>
</compile_context>

<pallas_src>
import functools

import jax
import jax.numpy as jnp
from jax.experimental import pallas as pl
from jax.experimental.pallas import tpu as pltpu

K = 3            # conv kernel size (stride=1, padding=1 -> "same")
EPS = 1e-5       # GroupNorm eps (PyTorch default)
NUM_GROUPS = 2   # nn.GroupNorm(2, C_out)
LANE = 128       # TPU lane width


def convsc_kernel(p_ref, w_ref, b_ref, gw_ref, gb_ref, o_ref, *, cout, hw):
    # p_ref : (1, HW, K*K*Cin)   im2col patches for one batch element
    # w_ref : (K*K*Cin, CP)      conv weight, Cout zero-padded to CP (lane-dense)
    # b_ref : (1, CP)            conv bias       (zero-padded)
    # gw_ref: (1, CP)            GroupNorm gamma (zero-padded)
    # gb_ref: (1, CP)            GroupNorm beta  (zero-padded)
    # o_ref : (1, HW, CP)        lane-dense output
    cp = o_ref.shape[-1]

    # ---- 3x3 "same" convolution == ONE wide matmul over the im2col patches ----
    y = jnp.dot(p_ref[0], w_ref[...], preferred_element_type=jnp.float32)
    y = y + b_ref[...]                                   # (HW, CP)

    # ---- GroupNorm(2): fused single-pass statistics, pad channels masked out ----
    gs = cout // NUM_GROUPS
    ch = jax.lax.broadcasted_iota(jnp.int32, (1, cp), 1)
    mask0 = (ch < gs).astype(jnp.float32)
    mask1 = jnp.logical_and(ch >= gs, ch < cout).astype(jnp.float32)
    inv_cnt = 1.0 / float(hw * gs)                       # elements per group (biased var)

    s = jnp.sum(y, axis=0, keepdims=True)                # (1, CP) per-channel sum
    ss = jnp.sum(y * y, axis=0, keepdims=True)           # (1, CP) per-channel sum-of-sq

    m0 = jnp.sum(s * mask0) * inv_cnt
    m1 = jnp.sum(s * mask1) * inv_cnt
    v0 = jnp.sum(ss * mask0) * inv_cnt - m0 * m0
    v1 = jnp.sum(ss * mask1) * inv_cnt - m1 * m1

    mean_vec = mask0 * m0 + mask1 * m1                   # (1, CP); zero on pad lanes
    inv_std = mask0 * jax.lax.rsqrt(v0 + EPS) + mask1 * jax.lax.rsqrt(v1 + EPS)
    yn = (y - mean_vec) * inv_std
    yn = yn * gw_ref[...] + gb_ref[...]                  # pad lanes -> exactly 0

    # ---- SiLU: x * sigmoid(x) ----
    o_ref[0] = (yn * jax.nn.sigmoid(yn)).astype(o_ref.dtype)


def convsc_forward(x_nchw, w_hwio, b, gn_w, gn_b):
    """x_nchw: (N, Cin, H, W) float32 -> (N, Cout, H, W) float32 (matches PyTorch)."""
    N, Cin, H, W = x_nchw.shape
    Cout = w_hwio.shape[-1]
    assert Cout % NUM_GROUPS == 0, "GroupNorm(2) requires Cout % 2 == 0"
    HW = H * W
    KKC = K * K * Cin
    CP = ((Cout + LANE - 1) // LANE) * LANE              # lane-dense padded channel dim

    # im2col in the wrapper: (N, H*W, K*K*Cin), channel order row-major over (kh, kw, ci)
    # to match w_hwio.reshape(K*K*Cin, Cout).
    x_nhwc = jnp.transpose(x_nchw, (0, 2, 3, 1))
    xp = jnp.pad(x_nhwc, ((0, 0), (1, 1), (1, 1), (0, 0)))   # padding=1 for k=3, s=1
    patches = jnp.concatenate(
        [xp[:, kh:kh + H, kw:kw + W, :] for kh in range(K) for kw in range(K)],
        axis=-1).reshape(N, HW, KKC)

    # Zero-pad the output-channel dim of all parameters to CP.
    w2d = jnp.zeros((KKC, CP), jnp.float32).at[:, :Cout].set(w_hwio.reshape(KKC, Cout))
    b2d = jnp.zeros((1, CP), jnp.float32).at[:, :Cout].set(b)
    gw2d = jnp.zeros((1, CP), jnp.float32).at[:, :Cout].set(gn_w)
    gb2d = jnp.zeros((1, CP), jnp.float32).at[:, :Cout].set(gn_b)

    kernel = functools.partial(convsc_kernel, cout=Cout, hw=HW)
    out_flat = pl.pallas_call(
        kernel,
        out_shape=jax.ShapeDtypeStruct((N, HW, CP), jnp.float32),
        grid_spec=pltpu.PrefetchScalarGridSpec(
            num_scalar_prefetch=0,
            grid=(N,),
            in_specs=[
                pl.BlockSpec((1, HW, KKC), lambda n: (n, 0, 0)),
                pl.BlockSpec((KKC, CP), lambda n: (0, 0)),
                pl.BlockSpec((1, CP), lambda n: (0, 0)),
                pl.BlockSpec((1, CP), lambda n: (0, 0)),
                pl.BlockSpec((1, CP), lambda n: (0, 0)),
            ],
            out_specs=pl.BlockSpec((1, HW, CP), lambda n: (n, 0, 0)),
        ),
        compiler_params=pltpu.CompilerParams(
            dimension_semantics=("parallel",)),
    )(patches, w2d, b2d, gw2d, gb2d)

    out = out_flat.reshape(N, H, W, CP)[..., :Cout]      # drop pad channels (lane-dense store kept in-kernel)
    return jnp.transpose(out, (0, 3, 1, 2))              # back to NCHW


def reference(x_nchw, w_hwio, b, gn_w, gn_b):
    """Pure-JAX reference mirroring Conv2d -> GroupNorm(2) -> SiLU."""
    x_nhwc = jnp.transpose(x_nchw, (0, 2, 3, 1))
    y = jax.lax.conv_general_dilated(
        x_nhwc, w_hwio, window_strides=(1, 1), padding='SAME',
        dimension_numbers=('NHWC', 'HWIO', 'NHWC'))
    y = y + b
    N, H, W, C = y.shape
    yg = y.reshape(N, H, W, NUM_GROUPS, C // NUM_GROUPS)
    m = jnp.mean(yg, axis=(1, 2, 4), keepdims=True)
    v = jnp.mean((yg - m) ** 2, axis=(1, 2, 4), keepdims=True)
    yn = ((yg - m) * jax.lax.rsqrt(v + EPS)).reshape(N, H, W, C)
    yn = yn * gn_w + gn_b
    out = yn * jax.nn.sigmoid(yn)
    return jnp.transpose(out, (0, 3, 1, 2))


if __name__ == "__main__":
    N, Cin, Cout, H, W = 2, 4, 8, 16, 16

    key = jax.random.PRNGKey(0)
    kx, kw = jax.random.split(key)
    x = jax.random.normal(kx, (N, Cin, H, W), jnp.float32)

    # Deterministic parameter init mirroring _init_weights:
    #   conv weight ~ trunc_normal(std=0.02), conv bias = 0,
    #   GroupNorm: weight = 1, bias = 0 (PyTorch defaults).
    w_hwio = 0.02 * jax.random.truncated_normal(kw, -2.0, 2.0,
                                                (K, K, Cin, Cout), jnp.float32)
    b = jnp.zeros((Cout,), jnp.float32)
    gn_w = jnp.ones((Cout,), jnp.float32)
    gn_b = jnp.zeros((Cout,), jnp.float32)

    out = jax.block_until_ready(convsc_forward(x, w_hwio, b, gn_w, gn_b))
    ref = reference(x, w_hwio, b, gn_w, gn_b)

    assert out.shape == (N, Cout, H, W), out.shape
    assert jnp.allclose(out, ref, atol=1e-4, rtol=1e-4), \
        float(jnp.max(jnp.abs(out - ref)))
    print("KERNEL_OK")
</pallas_src>

<mosaic_0001>
module attributes {stable_mosaic.version = 11 : i64} {
  func.func @convsc_kernel(%arg0: i32, %arg1: memref<1x256x36xf32, #tpu.memory_space<vmem>>, %arg2: memref<36x128xf32, #tpu.memory_space<vmem>>, %arg3: memref<1x128xf32, #tpu.memory_space<vmem>>, %arg4: memref<1x128xf32, #tpu.memory_space<vmem>>, %arg5: memref<1x128xf32, #tpu.memory_space<vmem>>, %arg6: memref<1x256x128xf32, #tpu.memory_space<vmem>>) attributes {dimension_semantics = [#tpu.dimension_semantics<parallel>], iteration_bounds = array<i64: 2>, scalar_prefetch = 0 : i64, scratch_operands = 0 : i64, tpu.core_type = #tpu.core_type<tc>, window_params = [{transform_indices = @transform_0, window_bounds = array<i64: 1, 256, 36>}, {pipeline_mode = #tpu.pipeline_mode<synchronous>, transform_indices = @transform_1, window_bounds = array<i64: 36, 128>}, {pipeline_mode = #tpu.pipeline_mode<synchronous>, transform_indices = @transform_2, window_bounds = array<i64: 1, 128>}, {pipeline_mode = #tpu.pipeline_mode<synchronous>, transform_indices = @transform_3, window_bounds = array<i64: 1, 128>}, {pipeline_mode = #tpu.pipeline_mode<synchronous>, transform_indices = @transform_4, window_bounds = array<i64: 1, 128>}, {transform_indices = @transform_5, window_bounds = array<i64: 1, 256, 128>}]} {
    %c0 = arith.constant 0 : index
    %c0_0 = arith.constant 0 : index
    %c0_1 = arith.constant 0 : index
    %0 = vector.load %arg1[%c0, %c0_0, %c0_1] : memref<1x256x36xf32, #tpu.memory_space<vmem>>, vector<1x256x36xf32>
    %1 = vector.shape_cast %0 : vector<1x256x36xf32> to vector<256x36xf32>
    %c0_2 = arith.constant 0 : index
    %c0_3 = arith.constant 0 : index
    %2 = vector.load %arg2[%c0_2, %c0_3] : memref<36x128xf32, #tpu.memory_space<vmem>>, vector<36x128xf32>
    %cst = arith.constant dense<0.000000e+00> : vector<256x128xf32>
    %3 = tpu.matmul %1, %2, %cst {dimension_numbers = #tpu.dot_dimension_numbers<[1], [0], [0], [1], [0, 0, 1, 1], [], []>} : vector<256x36xf32>, vector<36x128xf32>, vector<256x128xf32> -> vector<256x128xf32>
    %c0_4 = arith.constant 0 : index
    %c0_5 = arith.constant 0 : index
    %4 = vector.load %arg3[%c0_4, %c0_5] : memref<1x128xf32, #tpu.memory_space<vmem>>, vector<1x128xf32>
    %5 = vector.broadcast %4 : vector<1x128xf32> to vector<256x128xf32>
    %6 = arith.addf %3, %5 : vector<256x128xf32>
    %7 = tpu.iota {dimensions = array<i32: 1>} : vector<1x128xi32>
    %c4_i32 = arith.constant 4 : i32
    %8 = vector.broadcast %c4_i32 : i32 to vector<1x128xi32>
    %9 = arith.cmpi slt, %7, %8 : vector<1x128xi32>
    %10 = arith.extui %9 : vector<1x128xi1> to vector<1x128xi32>
    %11 = arith.sitofp %10 : vector<1x128xi32> to vector<1x128xf32>
    %c4_i32_6 = arith.constant 4 : i32
    %12 = vector.broadcast %c4_i32_6 : i32 to vector<1x128xi32>
    %13 = arith.cmpi sge, %7, %12 : vector<1x128xi32>
    %c8_i32 = arith.constant 8 : i32
    %14 = vector.broadcast %c8_i32 : i32 to vector<1x128xi32>
    %15 = arith.cmpi slt, %7, %14 : vector<1x128xi32>
    %16 = arith.andi %13, %15 : vector<1x128xi1>
    %17 = arith.extui %16 : vector<1x128xi1> to vector<1x128xi32>
    %18 = arith.sitofp %17 : vector<1x128xi32> to vector<1x128xf32>
    %cst_7 = arith.constant dense<0.000000e+00> : vector<128xf32>
    %19 = vector.multi_reduction <add>, %6, %cst_7 [0] : vector<256x128xf32> to vector<128xf32>
    %20 = vector.shape_cast %19 : vector<128xf32> to vector<1x128xf32>
    %21 = arith.mulf %6, %6 : vector<256x128xf32>
    %cst_8 = arith.constant dense<0.000000e+00> : vector<128xf32>
    %22 = vector.multi_reduction <add>, %21, %cst_8 [0] : vector<256x128xf32> to vector<128xf32>
    %23 = vector.shape_cast %22 : vector<128xf32> to vector<1x128xf32>
    %24 = arith.mulf %20, %11 : vector<1x128xf32>
    %25 = vector.shape_cast %24 : vector<1x128xf32> to vector<1x1x128xf32>
    %cst_9 = arith.constant dense<0.000000e+00> : vector<1xf32>
    %26 = vector.multi_reduction <add>, %25, %cst_9 [1, 2] : vector<1x1x128xf32> to vector<1xf32>
    %27 = vector.shape_cast %26 : vector<1xf32> to vector<1x1x1xf32>
    %28 = vector.extract %27[0, 0, 0] : f32 from vector<1x1x1xf32>
    %cst_10 = arith.constant 9.765625E-4 : f32
    %29 = arith.mulf %28, %cst_10 : f32
    %30 = arith.mulf %20, %18 : vector<1x128xf32>
    %31 = vector.shape_cast %30 : vector<1x128xf32> to vector<1x1x128xf32>
    %cst_11 = arith.constant dense<0.000000e+00> : vector<1xf32>
    %32 = vector.multi_reduction <add>, %31, %cst_11 [1, 2] : vector<1x1x128xf32> to vector<1xf32>
    %33 = vector.shape_cast %32 : vector<1xf32> to vector<1x1x1xf32>
    %34 = vector.extract %33[0, 0, 0] : f32 from vector<1x1x1xf32>
    %cst_12 = arith.constant 9.765625E-4 : f32
    %35 = arith.mulf %34, %cst_12 : f32
    %36 = arith.mulf %23, %11 : vector<1x128xf32>
    %37 = vector.shape_cast %36 : vector<1x128xf32> to vector<1x1x128xf32>
    %cst_13 = arith.constant dense<0.000000e+00> : vector<1xf32>
    %38 = vector.multi_reduction <add>, %37, %cst_13 [1, 2] : vector<1x1x128xf32> to vector<1xf32>
    %39 = vector.shape_cast %38 : vector<1xf32> to vector<1x1x1xf32>
    %40 = vector.extract %39[0, 0, 0] : f32 from vector<1x1x1xf32>
    %cst_14 = arith.constant 9.765625E-4 : f32
    %41 = arith.mulf %40, %cst_14 : f32
    %42 = arith.mulf %29, %29 : f32
    %43 = arith.subf %41, %42 : f32
    %44 = arith.mulf %23, %18 : vector<1x128xf32>
    %45 = vector.shape_cast %44 : vector<1x128xf32> to vector<1x1x128xf32>
    %cst_15 = arith.constant dense<0.000000e+00> : vector<1xf32>
    %46 = vector.multi_reduction <add>, %45, %cst_15 [1, 2] : vector<1x1x128xf32> to vector<1xf32>
    %47 = vector.shape_cast %46 : vector<1xf32> to vector<1x1x1xf32>
    %48 = vector.extract %47[0, 0, 0] : f32 from vector<1x1x1xf32>
    %cst_16 = arith.constant 9.765625E-4 : f32
    %49 = arith.mulf %48, %cst_16 : f32
    %50 = arith.mulf %35, %35 : f32
    %51 = arith.subf %49, %50 : f32
    %52 = vector.broadcast %29 : f32 to vector<1x128xf32>
    %53 = arith.mulf %11, %52 : vector<1x128xf32>
    %54 = vector.broadcast %35 : f32 to vector<1x128xf32>
    %55 = arith.mulf %18, %54 : vector<1x128xf32>
    %56 = arith.addf %53, %55 : vector<1x128xf32>
    %cst_17 = arith.constant 9.99999974E-6 : f32
    %57 = arith.addf %43, %cst_17 : f32
    %58 = math.rsqrt %57 : f32
    %59 = vector.broadcast %58 : f32 to vector<1x128xf32>
    %60 = arith.mulf %11, %59 : vector<1x128xf32>
    %cst_18 = arith.constant 9.99999974E-6 : f32
    %61 = arith.addf %51, %cst_18 : f32
    %62 = math.rsqrt %61 : f32
    %63 = vector.broadcast %62 : f32 to vector<1x128xf32>
    %64 = arith.mulf %18, %63 : vector<1x128xf32>
    %65 = arith.addf %60, %64 : vector<1x128xf32>
    %66 = vector.broadcast %56 : vector<1x128xf32> to vector<256x128xf32>
    %67 = arith.subf %6, %66 : vector<256x128xf32>
    %68 = vector.broadcast %65 : vector<1x128xf32> to vector<256x128xf32>
    %69 = arith.mulf %67, %68 : vector<256x128xf32>
    %c0_19 = arith.constant 0 : index
    %c0_20 = arith.constant 0 : index
    %70 = vector.load %arg4[%c0_19, %c0_20] : memref<1x128xf32, #tpu.memory_space<vmem>>, vector<1x128xf32>
    %71 = vector.broadcast %70 : vector<1x128xf32> to vector<256x128xf32>
    %72 = arith.mulf %69, %71 : vector<256x128xf32>
    %c0_21 = arith.constant 0 : index
    %c0_22 = arith.constant 0 : index
    %73 = vector.load %arg5[%c0_21, %c0_22] : memref<1x128xf32, #tpu.memory_space<vmem>>, vector<1x128xf32>
    %74 = vector.broadcast %73 : vector<1x128xf32> to vector<256x128xf32>
    %75 = arith.addf %72, %74 : vector<256x128xf32>
    %76 = arith.negf %75 : vector<256x128xf32>
    %77 = math.exp %76 : vector<256x128xf32>
    %cst_23 = arith.constant 1.000000e+00 : f32
    %78 = vector.broadcast %cst_23 : f32 to vector<256x128xf32>
    %79 = arith.addf %78, %77 : vector<256x128xf32>
    %80 = arith.divf %78, %79 : vector<256x128xf32>
    %81 = arith.mulf %75, %80 : vector<256x128xf32>
    %c0_24 = arith.constant 0 : index
    %c0_25 = arith.constant 0 : index
    %c0_26 = arith.constant 0 : index
    %82 = vector.load %arg6[%c0_24, %c0_25, %c0_26] : memref<1x256x128xf32, #tpu.memory_space<vmem>>, vector<1x256x128xf32>
    %83 = vector.shape_cast %82 : vector<1x256x128xf32> to vector<256x128xf32>
    %84 = vector.shape_cast %81 : vector<256x128xf32> to vector<1x256x128xf32>
    tpu.vector_store %arg6[%c0_24, %c0_25, %c0_26], %84 {strides = array<i32>} : memref<1x256x128xf32, #tpu.memory_space<vmem>>, vector<1x256x128xf32>,
    return
  }
  func.func @transform_0(%arg0: i32) -> (i32, i32, i32) {
    %c0_i32 = arith.constant 0 : i32
    %c0_i32_0 = arith.constant 0 : i32
    %c0_i32_1 = arith.constant 0 : i32
    return %arg0, %c0_i32, %c0_i32_0 : i32, i32, i32
  }
  func.func @transform_1(%arg0: i32) -> (i32, i32) {
    %c0_i32 = arith.constant 0 : i32
    %c0_i32_0 = arith.constant 0 : i32
    %c0_i32_1 = arith.constant 0 : i32
    return %c0_i32, %c0_i32_0 : i32, i32
  }
  func.func @transform_2(%arg0: i32) -> (i32, i32) {
    %c0_i32 = arith.constant 0 : i32
    %c0_i32_0 = arith.constant 0 : i32
    %c0_i32_1 = arith.constant 0 : i32
    return %c0_i32, %c0_i32_0 : i32, i32
  }
  func.func @transform_3(%arg0: i32) -> (i32, i32) {
    %c0_i32 = arith.constant 0 : i32
    %c0_i32_0 = arith.constant 0 : i32
    %c0_i32_1 = arith.constant 0 : i32
    return %c0_i32, %c0_i32_0 : i32, i32
  }
  func.func @transform_4(%arg0: i32) -> (i32, i32) {
    %c0_i32 = arith.constant 0 : i32
    %c0_i32_0 = arith.constant 0 : i32
    %c0_i32_1 = arith.constant 0 : i32
    return %c0_i32, %c0_i32_0 : i32, i32
  }
  func.func @transform_5(%arg0: i32) -> (i32, i32, i32) {
    %c0_i32 = arith.constant 0 : i32
    %c0_i32_0 = arith.constant 0 : i32
    %c0_i32_1 = arith.constant 0 : i32
    return %arg0, %c0_i32, %c0_i32_0 : i32, i32, i32
  }
}

</mosaic_0001>

<llo_original>
// kernel: tpu_custom_call.1
$region0: #{tpu_custom_call.1}
  #allocation0 [shape = 'u32[]', space=smem, size = 0x4, offset = 0x4, fixed_abs, tag = 'smem constant byte address 0x4 - core index']
  #allocation1 [shape = 'u32[72,128]{1,0:T(1,128)}', space=vmem, size = 0x9000, scoped, tag = 'internal scratch']
  %s0 = inlined_call_operand.vmem [shape: f32[2,256,36], index: 0, kind: input, shape index: {}]
  %s1 = inlined_call_operand.vmem [shape: f32[36,128], index: 1, kind: input, shape index: {}]
  %s2 = inlined_call_operand.vmem [shape: f32[1,128], index: 2, kind: input, shape index: {}]
  %s3 = inlined_call_operand.vmem [shape: f32[1,128], index: 3, kind: input, shape index: {}]
  %s4 = inlined_call_operand.vmem [shape: f32[1,128], index: 4, kind: input, shape index: {}]
  %s5 = inlined_call_operand.hbm [shape: f32[2,256,128], index: 5, kind: output, shape index: {}]
  %s6 = sld [smem:[#allocation0]]
  $region53: #{tpu_custom_call.1} parent=0
    _
  %s8 = ssub.s32 1, %s6
  %s9 = scalar_select 0, %s8, %s6
  $region1: #{tpu_custom_call.1} parent=0
    #allocation2 [shape = 'u8[262144]{0}', space=vmem, size = 0x40000, scoped, tag = 'output window, operand 0']
    #allocation3 [shape = 's32[2]{0}', space=sflag, size = 0x8, scoped, tag = 'scoped memory for tpu_custom_call.1']
    %10 = vsyncpa [#allocation3], 0
    %s11 = scalar_lea.sflag [#allocation3], 1
    %12 = vsyncpa %s11, 0
    loop: start=0, step=1, limit=4
    $region2: #{tpu_custom_call.1} parent=1 // loop_pre_header
      _
    $region3: #{tpu_custom_call.1} parent=1 // loop_header
      %s14 = sphi 0, %s18
      %p15 = scmp.ge.s32.totalorder %s14, 4
      %s24 = sphi 0, %s26
      %s27 = sphi 0, %s24
      %s28 = sphi 0, %s27
      %s44 = sphi 0, %s28
      %s48 = sphi 0, %s48
      %s50 = sphi 0, %s48
      %s51 = sphi 0, %s50
      %s65 = sphi 0, %s51
      %s69 = sphi 0, %s69
      %s71 = sphi 0, %s69
      %s72 = sphi 0, %s71
      %s86 = sphi 0, %s72
      %s90 = sphi 0, %s90
      %s92 = sphi 0, %s90
      %s93 = sphi 0, %s92
      %s107 = sphi 0, %s93
      %s111 = sphi 0, %s111
      %s113 = sphi 0, %s111
      %s114 = sphi 0, %s113
      %s128 = sphi 0, %s114
      %s134 = sphi 0, %s136
      %s137 = sphi 0, %s134
      %s138 = sphi 0, %s137
      %s154 = sphi 0, %s138
    $region4: #{tpu_custom_call.1} parent=1 // loop_header_branch
      %17 = sbr.rel (%p15) target = $region8
    $region5: #{tpu_custom_call.1} parent=1 // loop_body
      %s19 = ssub.s32 %s14, 1
      %s20 = ssub.s32 %s14, 2
      %s21 = sadd.s32 %s14, 1
      %s22 = ssub.s32 %s14, %s21
      %p23 = scmp.eq.s32.totalorder %s22, 0
      %s25 = sadd.s32 %s24, 1
      %s26 = scalar_select %p23, %s24, %s25
      %p29 = pneg %p23
      %p30 = scmp.eq.s32.totalorder %s14, 1
      %p31 = por %p29, %p30
      %p32 = scmp.ne.s32.totalorder %s24, %s27
      %p33 = scmp.eq.s32.totalorder %s14, 0
      %p34 = por %p32, %p33
      %p35 = scmp.ne.s32.totalorder %s24, %s27
      %p36 = scmp.eq.s32.totalorder %s19, 1
      %p37 = por %p35, %p36
      %p38 = scmp.ne.s32.totalorder %s27, %s28
      %p39 = scmp.eq.s32.totalorder %s19, 0
      %p40 = por %p38, %p39
      %p41 = scmp.ne.s32.totalorder %s27, %s28
      %p42 = scmp.eq.s32.totalorder %s20, 1
      %p43 = por %p41, %p42
      %p45 = scmp.ne.s32.totalorder %s28, %s44
      %p46 = scmp.eq.s32.totalorder %s20, 0
      %p47 = por %p45, %p46
      %s49 = sadd.s32 %s48, 1
      %p52 = scmp.eq.s32.totalorder %s14, 1
      %p53 = scmp.ne.s32.totalorder %s48, %s50
      %p54 = scmp.eq.s32.totalorder %s14, 0
      %p55 = por %p53, %p54
      %p56 = scmp.ne.s32.totalorder %s48, %s50
      %p57 = scmp.eq.s32.totalorder %s19, 1
      %p58 = por %p56, %p57
      %p59 = scmp.ne.s32.totalorder %s50, %s51
      %p60 = scmp.eq.s32.totalorder %s19, 0
      %p61 = por %p59, %p60
      %p62 = scmp.ne.s32.totalorder %s50, %s51
      %p63 = scmp.eq.s32.totalorder %s20, 1
      %p64 = por %p62, %p63
      %p66 = scmp.ne.s32.totalorder %s51, %s65
      %p67 = scmp.eq.s32.totalorder %s20, 0
      %p68 = por %p66, %p67
      %s70 = sadd.s32 %s69, 1
      %p73 = scmp.eq.s32.totalorder %s14, 1
      %p74 = scmp.ne.s32.totalorder %s69, %s71
      %p75 = scmp.eq.s32.totalorder %s14, 0
      %p76 = por %p74, %p75
      %p77 = scmp.ne.s32.totalorder %s69, %s71
      %p78 = scmp.eq.s32.totalorder %s19, 1
      %p79 = por %p77, %p78
      %p80 = scmp.ne.s32.totalorder %s71, %s72
      %p81 = scmp.eq.s32.totalorder %s19, 0
      %p82 = por %p80, %p81
      %p83 = scmp.ne.s32.totalorder %s71, %s72
      %p84 = scmp.eq.s32.totalorder %s20, 1
      %p85 = por %p83, %p84
      %p87 = scmp.ne.s32.totalorder %s72, %s86
      %p88 = scmp.eq.s32.totalorder %s20, 0
      %p89 = por %p87, %p88
      %s91 = sadd.s32 %s90, 1
      %p94 = scmp.eq.s32.totalorder %s14, 1
      %p95 = scmp.ne.s32.totalorder %s90, %s92
      %p96 = scmp.eq.s32.totalorder %s14, 0
      %p97 = por %p95, %p96
      %p98 = scmp.ne.s32.totalorder %s90, %s92
      %p99 = scmp.eq.s32.totalorder %s19, 1
      %p100 = por %p98, %p99
      %p101 = scmp.ne.s32.totalorder %s92, %s93
      %p102 = scmp.eq.s32.totalorder %s19, 0
      %p103 = por %p101, %p102
      %p104 = scmp.ne.s32.totalorder %s92, %s93
      %p105 = scmp.eq.s32.totalorder %s20, 1
      %p106 = por %p104, %p105
      %p108 = scmp.ne.s32.totalorder %s93, %s107
      %p109 = scmp.eq.s32.totalorder %s20, 0
      %p110 = por %p108, %p109
      %s112 = sadd.s32 %s111, 1
      %p115 = scmp.eq.s32.totalorder %s14, 1
      %p116 = scmp.ne.s32.totalorder %s111, %s113
      %p117 = scmp.eq.s32.totalorder %s14, 0
      %p118 = por %p116, %p117
      %p119 = scmp.ne.s32.totalorder %s111, %s113
      %p120 = scmp.eq.s32.totalorder %s19, 1
      %p121 = por %p119, %p120
      %p122 = scmp.ne.s32.totalorder %s113, %s114
      %p123 = scmp.eq.s32.totalorder %s19, 0
      %p124 = por %p122, %p123
      %p125 = scmp.ne.s32.totalorder %s113, %s114
      %p126 = scmp.eq.s32.totalorder %s20, 1
      %p127 = por %p125, %p126
      %p129 = scmp.ne.s32.totalorder %s114, %s128
      %p130 = scmp.eq.s32.totalorder %s20, 0
      %p131 = por %p129, %p130
      %s132 = ssub.s32 %s14, %s21
      %p133 = scmp.eq.s32.totalorder %s132, 0
      %s135 = sadd.s32 %s134, 1
      %s136 = scalar_select %p133, %s134, %s135
      %p139 = pneg %p133
      %p140 = scmp.eq.s32.totalorder %s14, 1
      %p141 = por %p139, %p140
      %p142 = scmp.ne.s32.totalorder %s134, %s137
      %p143 = scmp.eq.s32.totalorder %s14, 0
      %p144 = por %p142, %p143
      %p145 = scmp.ne.s32.totalorder %s134, %s137
      %p146 = scmp.eq.s32.totalorder %s19, 1
      %p147 = por %p145, %p146
      %p148 = scmp.ne.s32.totalorder %s137, %s138
      %p149 = scmp.eq.s32.totalorder %s19, 0
      %p150 = por %p148, %p149
      %p151 = scmp.ne.s32.totalorder %s137, %s138
      %p152 = scmp.eq.s32.totalorder %s20, 1
      %p153 = por %p151, %p152
      %p155 = scmp.ne.s32.totalorder %s138, %s154
      %p156 = scmp.eq.s32.totalorder %s20, 0
      %p157 = por %p155, %p156
      %p158 = scmp.le.s32.totalorder 1, %s14
      %p159 = scmp.lt.s32.totalorder %s14, 3
      %p160 = pnand %p158, %p159
      %p161 = pneg %p160
      // Predicated region
      $region9: #{tpu_custom_call.1} parent=5 // pred_check
        _
      $region10: #{tpu_custom_call.1} parent=5 // pred_check_branch
        %163 = sbr.rel (%p160) target = $region12
      $region11: #{tpu_custom_call.1} parent=5 // pred_region
        %s164 = ssub.s32 %s14, 1
        // Predicated region
        $region13: #{tpu_custom_call.1} parent=11 // pred_check
          %p165 = pneg %p61
        $region14: #{tpu_custom_call.1} parent=11 // pred_check_branch
          %167 = sbr.rel (%p165) target = $region16
        $region15: #{tpu_custom_call.1} parent=11 // pred_region
          _
        $region16: #{tpu_custom_call.1} parent=11 // pred_fallthru
          _
        // Predicated region
        $region17: #{tpu_custom_call.1} parent=11 // pred_check
          %p168 = pneg %p82
        $region18: #{tpu_custom_call.1} parent=11 // pred_check_branch
          %170 = sbr.rel (%p168) target = $region20
        $region19: #{tpu_custom_call.1} parent=11 // pred_region
          _
        $region20: #{tpu_custom_call.1} parent=11 // pred_fallthru
          _
        // Predicated region
        $region21: #{tpu_custom_call.1} parent=11 // pred_check
          %p171 = pneg %p103
        $region22: #{tpu_custom_call.1} parent=11 // pred_check_branch
          %173 = sbr.rel (%p171) target = $region24
        $region23: #{tpu_custom_call.1} parent=11 // pred_region
          _
        $region24: #{tpu_custom_call.1} parent=11 // pred_fallthru
          _
        // Predicated region
        $region25: #{tpu_custom_call.1} parent=11 // pred_check
          %p174 = pneg %p124
        $region26: #{tpu_custom_call.1} parent=11 // pred_check_branch
          %176 = sbr.rel (%p174) target = $region28
        $region27: #{tpu_custom_call.1} parent=11 // pred_region
          _
        $region28: #{tpu_custom_call.1} parent=11 // pred_fallthru
          _
      $region12: #{tpu_custom_call.1} parent=5 // pred_fallthru
        _
      %p177 = scmp.lt.s32.totalorder %s14, 2
      // Predicated region
      $region29: #{tpu_custom_call.1} parent=5 // pred_check
        %p178 = pneg %p177
      $region30: #{tpu_custom_call.1} parent=5 // pred_check_branch
        %180 = sbr.rel (%p178) target = $region32
      $region31: #{tpu_custom_call.1} parent=5 // pred_region
        // Predicated region
        $region33: #{tpu_custom_call.1} parent=31 // pred_check
          %p181 = pneg %p34
        $region34: #{tpu_custom_call.1} parent=31 // pred_check_branch
          %183 = sbr.rel (%p181) target = $region36
        $region35: #{tpu_custom_call.1} parent=31 // pred_region
          %p184 = scmp.lt.s32.totalorder %s14, 1
          %s185 = scalar_select %p184, %s14, 1
          %s186 = smul.addr %s185, 32
          %s187 = smul.addr %s186, 8
          %s188 = scalar_lea.vmem %s0, %s187
        $region36: #{tpu_custom_call.1} parent=31 // pred_fallthru
          _
      $region32: #{tpu_custom_call.1} parent=5 // pred_fallthru
        _
      %p189 = scmp.le.s32.totalorder 1, %s14
      %p190 = scmp.lt.s32.totalorder %s14, 3
      %p191 = pnand %p189, %p190
      %p192 = pneg %p191
      // Predicated region
      $region37: #{tpu_custom_call.1} parent=5 // pred_check
        _
      $region38: #{tpu_custom_call.1} parent=5 // pred_check_branch
        %194 = sbr.rel (%p191) target = $region40
      $region39: #{tpu_custom_call.1} parent=5 // pred_region
        %s195 = ssub.s32 %s14, 1
        %p196 = scmp.lt.s32.totalorder %s19, 1
        %s197 = scalar_select %p196, %s19, 1
        %s198 = smul.addr %s197, 32
        %s199 = smul.addr %s198, 8
        %s200 = scalar_lea.vmem %s0, %s199
        %p201 = pneg %p40
        %p202 = pneg %p37
        %p203 = pneg %p61
        %p204 = pneg %p58
        %p205 = pneg %p82
        %p206 = pneg %p79
        %p207 = pneg %p103
        %p208 = pneg %p100
        %p209 = pneg %p124
        %p210 = pneg %p121
        %p211 = pneg %p150
        %p212 = pneg %p147
        %s213 = sand.u32 %s137, 1
        %s214 = scalar_lea.sflag [#allocation3], %s213
        %s215 = sand.u32 %s137, 1
        %s216 = smul.addr %s215, 256
        %s217 = scalar_lea.vmem [#allocation2], %s216
        %p218 = scmp.lt.s32.totalorder %s19, 1
        %s219 = scalar_select %p218, %s19, 1
        %s220 = smul.addr %s219, 32
        %s221 = smul.addr %s220, 8
        %s222 = scalar_lea.vmem %s0, %s221
        %v223 = vld [vmem:[%s222] sm:$0xff]
        %v224 = vld [vmem:[%s222 + $0x8] sm:$0xff]
        %v225 = vld [vmem:[%s222 + $0x10] sm:$0xff]
        %v226 = vld [vmem:[%s222 + $0x18] sm:$0xff]
        %v227 = vld [vmem:[%s222 + $0x20] sm:$0xff]
        %v228 = vld [vmem:[%s222 + $0x28] sm:$0xff]
        %v229 = vld [vmem:[%s222 + $0x30] sm:$0xff]
        %v230 = vld [vmem:[%s222 + $0x38] sm:$0xff]
        %v231 = vld [vmem:[%s222 + $0x40] sm:$0xff]
        %v232 = vld [vmem:[%s222 + $0x48] sm:$0xff]
        %v233 = vld [vmem:[%s222 + $0x50] sm:$0xff]
        %v234 = vld [vmem:[%s222 + $0x58] sm:$0xff]
        %v235 = vld [vmem:[%s222 + $0x60] sm:$0xff]
        %v236 = vld [vmem:[%s222 + $0x68] sm:$0xff]
        %v237 = vld [vmem:[%s222 + $0x70] sm:$0xff]
        %v238 = vld [vmem:[%s222 + $0x78] sm:$0xff]
        %v239 = vld [vmem:[%s222 + $0x80] sm:$0xff]
        %v240 = vld [vmem:[%s222 + $0x88] sm:$0xff]
        %v241 = vld [vmem:[%s222 + $0x90] sm:$0xff]
        %v242 = vld [vmem:[%s222 + $0x98] sm:$0xff]
        %v243 = vld [vmem:[%s222 + $0xa0] sm:$0xff]
        %v244 = vld [vmem:[%s222 + $0xa8] sm:$0xff]
        %v245 = vld [vmem:[%s222 + $0xb0] sm:$0xff]
        %v246 = vld [vmem:[%s222 + $0xb8] sm:$0xff]
        %v247 = vld [vmem:[%s222 + $0xc0] sm:$0xff]
        %v248 = vld [vmem:[%s222 + $0xc8] sm:$0xff]
        %v249 = vld [vmem:[%s222 + $0xd0] sm:$0xff]
        %v250 = vld [vmem:[%s222 + $0xd8] sm:$0xff]
        %v251 = vld [vmem:[%s222 + $0xe0] sm:$0xff]
        %v252 = vld [vmem:[%s222 + $0xe8] sm:$0xff]
        %v253 = vld [vmem:[%s222 + $0xf0] sm:$0xff]
        %v254 = vld [vmem:[%s222 + $0xf8] sm:$0xff]
        %v255 = vld [vmem:[%s1] sm:$0xff]
        %v256 = vld [vmem:[%s1 + $0x8] sm:$0xff]
        %v257 = vld [vmem:[%s1 + $0x10] sm:$0xff]
        %v258 = vld [vmem:[%s1 + $0x18] sm:$0xff]
        %v259 = vld [vmem:[%s1 + $0x20] sm:$0xf]
        %v260 = vld [vmem:[%s2] sm:$0x1]
        %v262 = vperm.slane %v260, 0
        %vm264 = vcmask 293888
        %v266 = vsel %vm264, %v223, 0
        %v269 = vsel %vm264, %v224, 0
        %v272 = vsel %vm264, %v225, 0
        %v275 = vsel %vm264, %v226, 0
        %v278 = vsel %vm264, %v227, 0
        %v281 = vsel %vm264, %v228, 0
        %v284 = vsel %vm264, %v229, 0
        %v287 = vsel %vm264, %v230, 0
        %v290 = vsel %vm264, %v231, 0
        %v293 = vsel %vm264, %v232, 0
        %v296 = vsel %vm264, %v233, 0
        %v299 = vsel %vm264, %v234, 0
        %v302 = vsel %vm264, %v235, 0
        %v305 = vsel %vm264, %v236, 0
        %v308 = vsel %vm264, %v237, 0
        %v311 = vsel %vm264, %v238, 0
        %v314 = vsel %vm264, %v239, 0
        %v317 = vsel %vm264, %v240, 0
        %v320 = vsel %vm264, %v241, 0
        %v323 = vsel %vm264, %v242, 0
        %v326 = vsel %vm264, %v243, 0
        %v329 = vsel %vm264, %v244, 0
        %v332 = vsel %vm264, %v245, 0
        %v335 = vsel %vm264, %v246, 0
        %v338 = vsel %vm264, %v247, 0
        %v341 = vsel %vm264, %v248, 0
        %v344 = vsel %vm264, %v249, 0
        %v347 = vsel %vm264, %v250, 0
        %v350 = vsel %vm264, %v251, 0
        %v353 = vsel %vm264, %v252, 0
        %v356 = vsel %vm264, %v253, 0
        %v359 = vsel %vm264, %v254, 0
        %vm361 = vcmask 1043456
        %v363 = vsel %vm361, %v259, 0
        %365 = vmatpush.msra.mxu0 0.0
        %366 = vmatpush.msra.mxu0 0.0
        %367 = vmatpush.msra.mxu0 0.0
        %368 = vmatpush.msra.mxu0 0.0
        %369 = vmatpush.msra.mxu0 0.0
        %370 = vmatpush.msra.mxu0 0.0
        %371 = vmatpush.msra.mxu0 0.0
        %372 = vmatpush.msra.mxu0 0.0
        %373 = vmatpush.msra.mxu0 0.0
        %374 = vmatpush.msra.mxu0 0.0
        %375 = vmatpush.msra.mxu0 0.0
        %376 = vmatpush.msra.mxu0 %v363
        %377 = vmatpush.msra.mxu0 %v258
        %378 = vmatpush.msra.mxu0 %v257
        %379 = vmatpush.msra.mxu0 %v256
        %380 = vmatpush.msra.mxu0 %v255
        %381 = vmatmul.f32.gmra.mxu0 %v266
        %v382 = vpop.f32.mrf.mxu0
        %v383 = vadd.f32 %v262, %v382
        %384 = vmatmul.f32.gmra.mxu0 %v269
        %v385 = vpop.f32.mrf.mxu0
        %v386 = vadd.f32 %v262, %v385
        %387 = vmatmul.f32.gmra.mxu0 %v272
        %v388 = vpop.f32.mrf.mxu0
        %v389 = vadd.f32 %v262, %v388
        %390 = vmatmul.f32.gmra.mxu0 %v275
        %v391 = vpop.f32.mrf.mxu0
        %v392 = vadd.f32 %v262, %v391
        %393 = vmatmul.f32.gmra.mxu0 %v278
        %v394 = vpop.f32.mrf.mxu0
        %v395 = vadd.f32 %v262, %v394
        %396 = vmatmul.f32.gmra.mxu0 %v281
        %v397 = vpop.f32.mrf.mxu0
        %v398 = vadd.f32 %v262, %v397
        %399 = vmatmul.f32.gmra.mxu0 %v284
        %v400 = vpop.f32.mrf.mxu0
        %v401 = vadd.f32 %v262, %v400
        %402 = vmatmul.f32.gmra.mxu0 %v287
        %v403 = vpop.f32.mrf.mxu0
        %v404 = vadd.f32 %v262, %v403
        %405 = vmatmul.f32.gmra.mxu0 %v290
        %v406 = vpop.f32.mrf.mxu0
        %v407 = vadd.f32 %v262, %v406
        %408 = vmatmul.f32.gmra.mxu0 %v293
        %v409 = vpop.f32.mrf.mxu0
        %v410 = vadd.f32 %v262, %v409
        %411 = vmatmul.f32.gmra.mxu0 %v296
        %v412 = vpop.f32.mrf.mxu0
        %v413 = vadd.f32 %v262, %v412
        %414 = vmatmul.f32.gmra.mxu0 %v299
        %v415 = vpop.f32.mrf.mxu0
        %v416 = vadd.f32 %v262, %v415
        %417 = vmatmul.f32.gmra.mxu0 %v302
        %v418 = vpop.f32.mrf.mxu0
        %v419 = vadd.f32 %v262, %v418
        %420 = vmatmul.f32.gmra.mxu0 %v305
        %v421 = vpop.f32.mrf.mxu0
        %v422 = vadd.f32 %v262, %v421
        %423 = vmatmul.f32.gmra.mxu0 %v308
        %v424 = vpop.f32.mrf.mxu0
        %v425 = vadd.f32 %v262, %v424
        %426 = vmatmul.f32.gmra.mxu0 %v311
        %v427 = vpop.f32.mrf.mxu0
        %v428 = vadd.f32 %v262, %v427
        %429 = vmatmul.f32.gmra.mxu0 %v314
        %v430 = vpop.f32.mrf.mxu0
        %v431 = vadd.f32 %v262, %v430
        %432 = vmatmul.f32.gmra.mxu0 %v317
        %v433 = vpop.f32.mrf.mxu0
        %v434 = vadd.f32 %v262, %v433
        %435 = vmatmul.f32.gmra.mxu0 %v320
        %v436 = vpop.f32.mrf.mxu0
        %v437 = vadd.f32 %v262, %v436
        %438 = vmatmul.f32.gmra.mxu0 %v323
        %v439 = vpop.f32.mrf.mxu0
        %v440 = vadd.f32 %v262, %v439
        %441 = vmatmul.f32.gmra.mxu0 %v326
        %v442 = vpop.f32.mrf.mxu0
        %v443 = vadd.f32 %v262, %v442
        %444 = vmatmul.f32.gmra.mxu0 %v329
        %v445 = vpop.f32.mrf.mxu0
        %v446 = vadd.f32 %v262, %v445
        %447 = vmatmul.f32.gmra.mxu0 %v332
        %v448 = vpop.f32.mrf.mxu0
        %v449 = vadd.f32 %v262, %v448
        %450 = vmatmul.f32.gmra.mxu0 %v335
        %v451 = vpop.f32.mrf.mxu0
        %v452 = vadd.f32 %v262, %v451
        %453 = vmatmul.f32.gmra.mxu0 %v338
        %v454 = vpop.f32.mrf.mxu0
        %v455 = vadd.f32 %v262, %v454
        %456 = vmatmul.f32.gmra.mxu0 %v341
        %v457 = vpop.f32.mrf.mxu0
        %v458 = vadd.f32 %v262, %v457
        %459 = vmatmul.f32.gmra.mxu0 %v344
        %v460 = vpop.f32.mrf.mxu0
        %v461 = vadd.f32 %v262, %v460
        %462 = vmatmul.f32.gmra.mxu0 %v347
        %v463 = vpop.f32.mrf.mxu0
        %v464 = vadd.f32 %v262, %v463
        %465 = vmatmul.f32.gmra.mxu0 %v350
        %v466 = vpop.f32.mrf.mxu0
        %v467 = vadd.f32 %v262, %v466
        %468 = vmatmul.f32.gmra.mxu0 %v353
        %v469 = vpop.f32.mrf.mxu0
        %v470 = vadd.f32 %v262, %v469
        %471 = vmatmul.f32.gmra.mxu0 %v356
        %v472 = vpop.f32.mrf.mxu0
        %v473 = vadd.f32 %v262, %v472
        %474 = vmatmul.f32.gmra.mxu0 %v359
        %v475 = vpop.f32.mrf.mxu0
        %v476 = vadd.f32 %v262, %v475
        %477 = vdwg.mxu0
        %v478 = vlaneseq
        %v479 = vand.u32 %v478, 127
        %vm480 = vcmp.lt.s32.totalorder %v479, 4
        %v481 = vsel %vm480, 1, 0
        %v482 = vcvt.s32.f32 %v481
        %vm483 = vcmp.ge.s32.totalorder %v479, 4
        %vm484 = vcmp.lt.s32.totalorder %v479, 8
        %vm485 = vmand %vm483, %vm484
        %v486 = vsel %vm485, 1, 0
        %v487 = vcvt.s32.f32 %v486
        %v488 = vadd.f32 %v383, %v386
        %v489 = vadd.f32 %v488, %v389
        %v490 = vadd.f32 %v489, %v392
        %v491 = vadd.f32 %v490, %v395
        %v492 = vadd.f32 %v491, %v398
        %v493 = vadd.f32 %v492, %v401
        %v494 = vadd.f32 %v493, %v404
        %v495 = vadd.f32 %v494, %v407
        %v496 = vadd.f32 %v495, %v410
        %v497 = vadd.f32 %v496, %v413
        %v498 = vadd.f32 %v497, %v416
        %v499 = vadd.f32 %v498, %v419
        %v500 = vadd.f32 %v499, %v422
        %v501 = vadd.f32 %v500, %v425
        %v502 = vadd.f32 %v501, %v428
        %v503 = vadd.f32 %v502, %v431
        %v504 = vadd.f32 %v503, %v434
        %v505 = vadd.f32 %v504, %v437
        %v506 = vadd.f32 %v505, %v440
        %v507 = vadd.f32 %v506, %v443
        %v508 = vadd.f32 %v507, %v446
        %v509 = vadd.f32 %v508, %v449
        %v510 = vadd.f32 %v509, %v452
        %v511 = vadd.f32 %v510, %v455
        %v512 = vadd.f32 %v511, %v458
        %v513 = vadd.f32 %v512, %v461
        %v514 = vadd.f32 %v513, %v464
        %v515 = vadd.f32 %v514, %v467
        %v516 = vadd.f32 %v515, %v470
        %v517 = vadd.f32 %v516, %v473
        %v518 = vadd.f32 %v517, %v476
        %v519 = vrot.slane %v518, 4
        %v520 = vadd.f32 %v518, %v519
        %v521 = vrot.slane %v520, 2
        %v522 = vadd.f32 %v520, %v521
        %v523 = vrot.slane %v522, 1
        %v524 = vadd.f32 %v522, %v523
        %v525 = vmul.f32 %v383, %v383
        %v526 = vmul.f32 %v386, %v386
        %v527 = vmul.f32 %v389, %v389
        %v528 = vmul.f32 %v392, %v392
        %v529 = vmul.f32 %v395, %v395
        %v530 = vmul.f32 %v398, %v398
        %v531 = vmul.f32 %v401, %v401
        %v532 = vmul.f32 %v404, %v404
        %v533 = vmul.f32 %v407, %v407
        %v534 = vmul.f32 %v410, %v410
        %v535 = vmul.f32 %v413, %v413
        %v536 = vmul.f32 %v416, %v416
        %v537 = vmul.f32 %v419, %v419
        %v538 = vmul.f32 %v422, %v422
        %v539 = vmul.f32 %v425, %v425
        %v540 = vmul.f32 %v428, %v428
        %v541 = vmul.f32 %v431, %v431
        %v542 = vmul.f32 %v434, %v434
        %v543 = vmul.f32 %v437, %v437
        %v544 = vmul.f32 %v440, %v440
        %v545 = vmul.f32 %v443, %v443
        %v546 = vmul.f32 %v446, %v446
        %v547 = vmul.f32 %v449, %v449
        %v548 = vmul.f32 %v452, %v452
        %v549 = vmul.f32 %v455, %v455
        %v550 = vmul.f32 %v458, %v458
        %v551 = vmul.f32 %v461, %v461
        %v552 = vmul.f32 %v464, %v464
        %v553 = vmul.f32 %v467, %v467
        %v554 = vmul.f32 %v470, %v470
        %v555 = vmul.f32 %v473, %v473
        %v556 = vmul.f32 %v476, %v476
        %v557 = vadd.f32 %v525, %v526
        %v558 = vadd.f32 %v557, %v527
        %v559 = vadd.f32 %v558, %v528
        %v560 = vadd.f32 %v559, %v529
        %v561 = vadd.f32 %v560, %v530
        %v562 = vadd.f32 %v561, %v531
        %v563 = vadd.f32 %v562, %v532
        %v564 = vadd.f32 %v563, %v533
        %v565 = vadd.f32 %v564, %v534
        %v566 = vadd.f32 %v565, %v535
        %v567 = vadd.f32 %v566, %v536
        %v568 = vadd.f32 %v567, %v537
        %v569 = vadd.f32 %v568, %v538
        %v570 = vadd.f32 %v569, %v539
        %v571 = vadd.f32 %v570, %v540
        %v572 = vadd.f32 %v571, %v541
        %v573 = vadd.f32 %v572, %v542
        %v574 = vadd.f32 %v573, %v543
        %v575 = vadd.f32 %v574, %v544
        %v576 = vadd.f32 %v575, %v545
        %v577 = vadd.f32 %v576, %v546
        %v578 = vadd.f32 %v577, %v547
        %v579 = vadd.f32 %v578, %v548
        %v580 = vadd.f32 %v579, %v549
        %v581 = vadd.f32 %v580, %v550
        %v582 = vadd.f32 %v581, %v551
        %v583 = vadd.f32 %v582, %v552
        %v584 = vadd.f32 %v583, %v553
        %v585 = vadd.f32 %v584, %v554
        %v586 = vadd.f32 %v585, %v555
        %v587 = vadd.f32 %v586, %v556
        %v588 = vrot.slane %v587, 4
        %v589 = vadd.f32 %v587, %v588
        %v590 = vrot.slane %v589, 2
        %v591 = vadd.f32 %v589, %v590
        %v592 = vrot.slane %v591, 1
        %v593 = vadd.f32 %v591, %v592
        %v594 = vmul.f32 %v524, %v482
        %vm595 = vcmask 1040384
        %v596 = vsel %vm595, %v594, 0.0
        %597 = vadd.xlane.f32.xlu0 %v596
        %v598 = vpop.xlane.xlu0 %597
        %v599 = vrot.slane %v598, 4
        %v600 = vadd.f32 %v598, %v599
        %v601 = vrot.slane %v600, 2
        %v602 = vadd.f32 %v600, %v601
        %v603 = vrot.slane %v602, 1
        %v604 = vadd.f32 %v602, %v603
        %s605 = vtos %v604
        %s606 = smul.f32 %s605, 0.0009765625
        %v607 = vmul.f32 %v524, %v487
        %v608 = vsel %vm595, %v607, 0.0
        %609 = vadd.xlane.f32.xlu0 %v608
        %v610 = vpop.xlane.xlu0 %609
        %v611 = vrot.slane %v610, 4
        %v612 = vadd.f32 %v610, %v611
        %v613 = vrot.slane %v612, 2
        %v614 = vadd.f32 %v612, %v613
        %v615 = vrot.slane %v614, 1
        %v616 = vadd.f32 %v614, %v615
        %s617 = vtos %v616
        %s618 = smul.f32 %s617, 0.0009765625
        %v619 = vmul.f32 %v593, %v482
        %v620 = vsel %vm595, %v619, 0.0
        %621 = vadd.xlane.f32.xlu0 %v620
        %v622 = vpop.xlane.xlu0 %621
        %v623 = vrot.slane %v622, 4
        %v624 = vadd.f32 %v622, %v623
        %v625 = vrot.slane %v624, 2
        %v626 = vadd.f32 %v624, %v625
        %v627 = vrot.slane %v626, 1
        %v628 = vadd.f32 %v626, %v627
        %s629 = vtos %v628
        %s630 = smul.f32 %s629, 0.0009765625
        %s631 = smul.f32 %s606, %s606
        %s632 = ssub.f32 %s630, %s631
        %v633 = vmul.f32 %v593, %v487
        %v634 = vsel %vm595, %v633, 0.0
        %635 = vadd.xlane.f32.xlu0 %v634
        %v636 = vpop.xlane.xlu0 %635
        %v637 = vrot.slane %v636, 4
        %v638 = vadd.f32 %v636, %v637
        %v639 = vrot.slane %v638, 2
        %v640 = vadd.f32 %v638, %v639
        %v641 = vrot.slane %v640, 1
        %v642 = vadd.f32 %v640, %v641
        %s643 = vtos %v642
        %s644 = smul.f32 %s643, 0.0009765625
        %s645 = smul.f32 %s618, %s618
        %s646 = ssub.f32 %s644, %s645
        %v647 = vstv %s606
        %v648 = vmul.f32 %v482, %v647
        %v649 = vstv %s618
        %v650 = vmul.f32 %v487, %v649
        %v651 = vadd.f32 %v648, %v650
        %s652 = sadd.f32 %s632, 1e-05
        %v653 = vstv %s652
        %v654 = vrsqrt.pop %v653
        %v655 = vmul.f32 %v654, %v653
        %v656 = vmul.f32 %v655, %v654
        %v657 = vmul.f32 0.5, %v656
        %v658 = vsub.f32 1.5, %v657
        %v659 = vmul.f32 %v654, %v658
        %vm660 = vweird.f32 %v653
        %vm661 = vweird.f32 %v654
        %vm662 = vmor %vm660, %vm661
        %v663 = vsel %vm662, %v654, %v659
        %s664 = vtos %v663
        %v665 = vstv %s664
        %v666 = vmul.f32 %v482, %v665
        %s667 = sadd.f32 %s646, 1e-05
        %v668 = vstv %s667
        %v669 = vrsqrt.pop %v668
        %v670 = vmul.f32 %v669, %v668
        %v671 = vmul.f32 %v670, %v669
        %v672 = vmul.f32 0.5, %v671
        %v673 = vsub.f32 1.5, %v672
        %v674 = vmul.f32 %v669, %v673
        %vm675 = vweird.f32 %v668
        %vm676 = vweird.f32 %v669
        %vm677 = vmor %vm675, %vm676
        %v678 = vsel %vm677, %v669, %v674
        %s679 = vtos %v678
        %v680 = vstv %s679
        %v681 = vmul.f32 %v487, %v680
        %v682 = vadd.f32 %v666, %v681
        %v683 = vsub.f32 %v383, %v651
        %v684 = vsub.f32 %v386, %v651
        %v685 = vsub.f32 %v389, %v651
        %v686 = vsub.f32 %v392, %v651
        %v687 = vsub.f32 %v395, %v651
        %v688 = vsub.f32 %v398, %v651
        %v689 = vsub.f32 %v401, %v651
        %v690 = vsub.f32 %v404, %v651
        %v691 = vsub.f32 %v407, %v651
        %v692 = vsub.f32 %v410, %v651
        %v693 = vsub.f32 %v413, %v651
        %v694 = vsub.f32 %v416, %v651
        %v695 = vsub.f32 %v419, %v651
        %v696 = vsub.f32 %v422, %v651
        %v697 = vsub.f32 %v425, %v651
        %v698 = vsub.f32 %v428, %v651
        %v699 = vsub.f32 %v431, %v651
        %v700 = vsub.f32 %v434, %v651
        %v701 = vsub.f32 %v437, %v651
        %v702 = vsub.f32 %v440, %v651
        %v703 = vsub.f32 %v443, %v651
        %v704 = vsub.f32 %v446, %v651
        %v705 = vsub.f32 %v449, %v651
        %v706 = vsub.f32 %v452, %v651
        %v707 = vsub.f32 %v455, %v651
        %v708 = vsub.f32 %v458, %v651
        %v709 = vsub.f32 %v461, %v651
        %v710 = vsub.f32 %v464, %v651
        %v711 = vsub.f32 %v467, %v651
        %v712 = vsub.f32 %v470, %v651
        %v713 = vsub.f32 %v473, %v651
        %v714 = vsub.f32 %v476, %v651
        %v715 = vmul.f32 %v683, %v682
        %v716 = vmul.f32 %v684, %v682
        %v717 = vmul.f32 %v685, %v682
        %v718 = vmul.f32 %v686, %v682
        %v719 = vmul.f32 %v687, %v682
        %v720 = vmul.f32 %v688, %v682
        %v721 = vmul.f32 %v689, %v682
        %v722 = vmul.f32 %v690, %v682
        %v723 = vmul.f32 %v691, %v682
        %v724 = vmul.f32 %v692, %v682
        %v725 = vmul.f32 %v693, %v682
        %v726 = vmul.f32 %v694, %v682
        %v727 = vmul.f32 %v695, %v682
        %v728 = vmul.f32 %v696, %v682
        %v729 = vmul.f32 %v697, %v682
        %v730 = vmul.f32 %v698, %v682
        %v731 = vmul.f32 %v699, %v682
        %v732 = vmul.f32 %v700, %v682
        %v733 = vmul.f32 %v701, %v682
        %v734 = vmul.f32 %v702, %v682
        %v735 = vmul.f32 %v703, %v682
        %v736 = vmul.f32 %v704, %v682
        %v737 = vmul.f32 %v705, %v682
        %v738 = vmul.f32 %v706, %v682
        %v739 = vmul.f32 %v707, %v682
        %v740 = vmul.f32 %v708, %v682
        %v741 = vmul.f32 %v709, %v682
        %v742 = vmul.f32 %v710, %v682
        %v743 = vmul.f32 %v711, %v682
        %v744 = vmul.f32 %v712, %v682
        %v745 = vmul.f32 %v713, %v682
        %v746 = vmul.f32 %v714, %v682
        %v747 = vld [vmem:[%s3] sm:$0x1]
        %v749 = vperm.slane %v747, 0
        %v751 = vmul.f32 %v715, %v749
        %v752 = vmul.f32 %v716, %v749
        %v753 = vmul.f32 %v717, %v749
        %v754 = vmul.f32 %v718, %v749
        %v755 = vmul.f32 %v719, %v749
        %v756 = vmul.f32 %v720, %v749
        %v757 = vmul.f32 %v721, %v749
        %v758 = vmul.f32 %v722, %v749
        %v759 = vmul.f32 %v723, %v749
        %v760 = vmul.f32 %v724, %v749
        %v761 = vmul.f32 %v725, %v749
        %v762 = vmul.f32 %v726, %v749
        %v763 = vmul.f32 %v727, %v749
        %v764 = vmul.f32 %v728, %v749
        %v765 = vmul.f32 %v729, %v749
        %v766 = vmul.f32 %v730, %v749
        %v767 = vmul.f32 %v731, %v749
        %v768 = vmul.f32 %v732, %v749
        %v769 = vmul.f32 %v733, %v749
        %v770 = vmul.f32 %v734, %v749
        %v771 = vmul.f32 %v735, %v749
        %v772 = vmul.f32 %v736, %v749
        %v773 = vmul.f32 %v737, %v749
        %v774 = vmul.f32 %v738, %v749
        %v775 = vmul.f32 %v739, %v749
        %v776 = vmul.f32 %v740, %v749
        %v777 = vmul.f32 %v741, %v749
        %v778 = vmul.f32 %v742, %v749
        %v779 = vmul.f32 %v743, %v749
        %v780 = vmul.f32 %v744, %v749
        %v781 = vmul.f32 %v745, %v749
        %v782 = vmul.f32 %v746, %v749
        %v783 = vld [vmem:[%s4] sm:$0x1]
        %v785 = vperm.slane %v783, 0
        %v787 = vadd.f32 %v751, %v785
        %v788 = vadd.f32 %v752, %v785
        %v789 = vadd.f32 %v753, %v785
        %v790 = vadd.f32 %v754, %v785
        %v791 = vadd.f32 %v755, %v785
        %v792 = vadd.f32 %v756, %v785
        %v793 = vadd.f32 %v757, %v785
        %v794 = vadd.f32 %v758, %v785
        %v795 = vadd.f32 %v759, %v785
        %v796 = vadd.f32 %v760, %v785
        %v797 = vadd.f32 %v761, %v785
        %v798 = vadd.f32 %v762, %v785
        %v799 = vadd.f32 %v763, %v785
        %v800 = vadd.f32 %v764, %v785
        %v801 = vadd.f32 %v765, %v785
        %v802 = vadd.f32 %v766, %v785
        %v803 = vadd.f32 %v767, %v785
        %v804 = vadd.f32 %v768, %v785
        %v805 = vadd.f32 %v769, %v785
        %v806 = vadd.f32 %v770, %v785
        %v807 = vadd.f32 %v771, %v785
        %v808 = vadd.f32 %v772, %v785
        %v809 = vadd.f32 %v773, %v785
        %v810 = vadd.f32 %v774, %v785
        %v811 = vadd.f32 %v775, %v785
        %v812 = vadd.f32 %v776, %v785
        %v813 = vadd.f32 %v777, %v785
        %v814 = vadd.f32 %v778, %v785
        %v815 = vadd.f32 %v779, %v785
        %v816 = vadd.f32 %v780, %v785
        %v817 = vadd.f32 %v781, %v785
        %v818 = vadd.f32 %v782, %v785
        %v819 = vxor.u32 %v787, 2147483648
        %v820 = vxor.u32 %v788, 2147483648
        %v821 = vxor.u32 %v789, 2147483648
        %v822 = vxor.u32 %v790, 2147483648
        %v823 = vxor.u32 %v791, 2147483648
        %v824 = vxor.u32 %v792, 2147483648
        %v825 = vxor.u32 %v793, 2147483648
        %v826 = vxor.u32 %v794, 2147483648
        %v827 = vxor.u32 %v795, 2147483648
        %v828 = vxor.u32 %v796, 2147483648
        %v829 = vxor.u32 %v797, 2147483648
        %v830 = vxor.u32 %v798, 2147483648
        %v831 = vxor.u32 %v799, 2147483648
        %v832 = vxor.u32 %v800, 2147483648
        %v833 = vxor.u32 %v801, 2147483648
        %v834 = vxor.u32 %v802, 2147483648
        %v835 = vxor.u32 %v803, 2147483648
        %v836 = vxor.u32 %v804, 2147483648
        %v837 = vxor.u32 %v805, 2147483648
        %v838 = vxor.u32 %v806, 2147483648
        %v839 = vxor.u32 %v807, 2147483648
        %v840 = vxor.u32 %v808, 2147483648
        %v841 = vxor.u32 %v809, 2147483648
        %v842 = vxor.u32 %v810, 2147483648
        %v843 = vxor.u32 %v811, 2147483648
        %v844 = vxor.u32 %v812, 2147483648
        %v845 = vxor.u32 %v813, 2147483648
        %v846 = vxor.u32 %v814, 2147483648
        %v847 = vxor.u32 %v815, 2147483648
        %v848 = vxor.u32 %v816, 2147483648
        %v849 = vxor.u32 %v817, 2147483648
        %v850 = vxor.u32 %v818, 2147483648
        %v851 = vmul.f32 %v819, 1.442695
        %v852 = vpow.pop %v851
        %v853 = vmul.f32 %v820, 1.442695
        %v854 = vpow.pop %v853
        %v855 = vmul.f32 %v821, 1.442695
        %v856 = vpow.pop %v855
        %v857 = vmul.f32 %v822, 1.442695
        %v858 = vpow.pop %v857
        %v859 = vmul.f32 %v823, 1.442695
        %v860 = vpow.pop %v859
        %v861 = vmul.f32 %v824, 1.442695
        %v862 = vpow.pop %v861
        %v863 = vmul.f32 %v825, 1.442695
        %v864 = vpow.pop %v863
        %v865 = vmul.f32 %v826, 1.442695
        %v866 = vpow.pop %v865
        %v867 = vmul.f32 %v827, 1.442695
        %v868 = vpow.pop %v867
        %v869 = vmul.f32 %v828, 1.442695
        %v870 = vpow.pop %v869
        %v871 = vmul.f32 %v829, 1.442695
        %v872 = vpow.pop %v871
        %v873 = vmul.f32 %v830, 1.442695
        %v874 = vpow.pop %v873
        %v875 = vmul.f32 %v831, 1.442695
        %v876 = vpow.pop %v875
        %v877 = vmul.f32 %v832, 1.442695
        %v878 = vpow.pop %v877
        %v879 = vmul.f32 %v833, 1.442695
        %v880 = vpow.pop %v879
        %v881 = vmul.f32 %v834, 1.442695
        %v882 = vpow.pop %v881
        %v883 = vmul.f32 %v835, 1.442695
        %v884 = vpow.pop %v883
        %v885 = vmul.f32 %v836, 1.442695
        %v886 = vpow.pop %v885
        %v887 = vmul.f32 %v837, 1.442695
        %v888 = vpow.pop %v887
        %v889 = vmul.f32 %v838, 1.442695
        %v890 = vpow.pop %v889
        %v891 = vmul.f32 %v839, 1.442695
        %v892 = vpow.pop %v891
        %v893 = vmul.f32 %v840, 1.442695
        %v894 = vpow.pop %v893
        %v895 = vmul.f32 %v841, 1.442695
        %v896 = vpow.pop %v895
        %v897 = vmul.f32 %v842, 1.442695
        %v898 = vpow.pop %v897
        %v899 = vmul.f32 %v843, 1.442695
        %v900 = vpow.pop %v899
        %v901 = vmul.f32 %v844, 1.442695
        %v902 = vpow.pop %v901
        %v903 = vmul.f32 %v845, 1.442695
        %v904 = vpow.pop %v903
        %v905 = vmul.f32 %v846, 1.442695
        %v906 = vpow.pop %v905
        %v907 = vmul.f32 %v847, 1.442695
        %v908 = vpow.pop %v907
        %v909 = vmul.f32 %v848, 1.442695
        %v910 = vpow.pop %v909
        %v911 = vmul.f32 %v849, 1.442695
        %v912 = vpow.pop %v911
        %v913 = vmul.f32 %v850, 1.442695
        %v914 = vpow.pop %v913
        %v915 = vadd.f32 %v852, 1.0
        %v916 = vadd.f32 %v854, 1.0
        %v917 = vadd.f32 %v856, 1.0
        %v918 = vadd.f32 %v858, 1.0
        %v919 = vadd.f32 %v860, 1.0
        %v920 = vadd.f32 %v862, 1.0
        %v921 = vadd.f32 %v864, 1.0
        %v922 = vadd.f32 %v866, 1.0
        %v923 = vadd.f32 %v868, 1.0
        %v924 = vadd.f32 %v870, 1.0
        %v925 = vadd.f32 %v872, 1.0
        %v926 = vadd.f32 %v874, 1.0
        %v927 = vadd.f32 %v876, 1.0
        %v928 = vadd.f32 %v878, 1.0
        %v929 = vadd.f32 %v880, 1.0
        %v930 = vadd.f32 %v882, 1.0
        %v931 = vadd.f32 %v884, 1.0
        %v932 = vadd.f32 %v886, 1.0
        %v933 = vadd.f32 %v888, 1.0
        %v934 = vadd.f32 %v890, 1.0
        %v935 = vadd.f32 %v892, 1.0
        %v936 = vadd.f32 %v894, 1.0
        %v937 = vadd.f32 %v896, 1.0
        %v938 = vadd.f32 %v898, 1.0
        %v939 = vadd.f32 %v900, 1.0
        %v940 = vadd.f32 %v902, 1.0
        %v941 = vadd.f32 %v904, 1.0
        %v942 = vadd.f32 %v906, 1.0
        %v943 = vadd.f32 %v908, 1.0
        %v944 = vadd.f32 %v910, 1.0
        %v945 = vadd.f32 %v912, 1.0
        %v946 = vadd.f32 %v914, 1.0
        %v947 = vrcp.pop %v915
        %v948 = vmul.f32 %v915, %v947
        %v949 = vsub.f32 1.0, %v948
        %v950 = vmul.f32 %v947, %v949
        %v951 = vadd.f32 %v947, %v950
        %vm952 = vweird.f32 %v915
        %vm953 = vweird.f32 %v947
        %vm954 = vmor %vm952, %vm953
        %v955 = vsel %vm954, %v947, %v951
        %v956 = vand.u32 2147483647, %v915
        %vm957 = vcmp.eq.f32.partialorder %v956, 8.507059e+37
        %v958 = vand.u32 %v915, 2147483648
        %v959 = vor.u32 1.1754944e-38, %v958
        %v960 = vsel %vm957, %v959, %v955
        %v961 = vmul.f32 1.0, %v960
        %v962 = vrcp.pop %v916
        %v963 = vmul.f32 %v916, %v962
        %v964 = vsub.f32 1.0, %v963
        %v965 = vmul.f32 %v962, %v964
        %v966 = vadd.f32 %v962, %v965
        %vm967 = vweird.f32 %v916
        %vm968 = vweird.f32 %v962
        %vm969 = vmor %vm967, %vm968
        %v970 = vsel %vm969, %v962, %v966
        %v971 = vand.u32 2147483647, %v916
        %vm972 = vcmp.eq.f32.partialorder %v971, 8.507059e+37
        %v973 = vand.u32 %v916, 2147483648
        %v974 = vor.u32 1.1754944e-38, %v973
        %v975 = vsel %vm972, %v974, %v970
        %v976 = vmul.f32 1.0, %v975
        %v977 = vrcp.pop %v917
        %v978 = vmul.f32 %v917, %v977
        %v979 = vsub.f32 1.0, %v978
        %v980 = vmul.f32 %v977, %v979
        %v981 = vadd.f32 %v977, %v980
        %vm982 = vweird.f32 %v917
        %vm983 = vweird.f32 %v977
        %vm984 = vmor %vm982, %vm983
        %v985 = vsel %vm984, %v977, %v981
        %v986 = vand.u32 2147483647, %v917
        %vm987 = vcmp.eq.f32.partialorder %v986, 8.507059e+37
        %v988 = vand.u32 %v917, 2147483648
        %v989 = vor.u32 1.1754944e-38, %v988
        %v990 = vsel %vm987, %v989, %v985
        %v991 = vmul.f32 1.0, %v990
        %v992 = vrcp.pop %v918
        %v993 = vmul.f32 %v918, %v992
        %v994 = vsub.f32 1.0, %v993
        %v995 = vmul.f32 %v992, %v994
        %v996 = vadd.f32 %v992, %v995
        %vm997 = vweird.f32 %v918
        %vm998 = vweird.f32 %v992
        %vm999 = vmor %vm997, %vm998
        %v1000 = vsel %vm999, %v992, %v996
        %v1001 = vand.u32 2147483647, %v918
        %vm1002 = vcmp.eq.f32.partialorder %v1001, 8.507059e+37
        %v1003 = vand.u32 %v918, 2147483648
        %v1004 = vor.u32 1.1754944e-38, %v1003
        %v1005 = vsel %vm1002, %v1004, %v1000
        %v1006 = vmul.f32 1.0, %v1005
        %v1007 = vrcp.pop %v919
        %v1008 = vmul.f32 %v919, %v1007
        %v1009 = vsub.f32 1.0, %v1008
        %v1010 = vmul.f32 %v1007, %v1009
        %v1011 = vadd.f32 %v1007, %v1010
        %vm1012 = vweird.f32 %v919
        %vm1013 = vweird.f32 %v1007
        %vm1014 = vmor %vm1012, %vm1013
        %v1015 = vsel %vm1014, %v1007, %v1011
        %v1016 = vand.u32 2147483647, %v919
        %vm1017 = vcmp.eq.f32.partialorder %v1016, 8.507059e+37
        %v1018 = vand.u32 %v919, 2147483648
        %v1019 = vor.u32 1.1754944e-38, %v1018
        %v1020 = vsel %vm1017, %v1019, %v1015
        %v1021 = vmul.f32 1.0, %v1020
        %v1022 = vrcp.pop %v920
        %v1023 = vmul.f32 %v920, %v1022
        %v1024 = vsub.f32 1.0, %v1023
        %v1025 = vmul.f32 %v1022, %v1024
        %v1026 = vadd.f32 %v1022, %v1025
        %vm1027 = vweird.f32 %v920
        %vm1028 = vweird.f32 %v1022
        %vm1029 = vmor %vm1027, %vm1028
        %v1030 = vsel %vm1029, %v1022, %v1026
        %v1031 = vand.u32 2147483647, %v920
        %vm1032 = vcmp.eq.f32.partialorder %v1031, 8.507059e+37
        %v1033 = vand.u32 %v920, 2147483648
        %v1034 = vor.u32 1.1754944e-38, %v1033
        %v1035 = vsel %vm1032, %v1034, %v1030
        %v1036 = vmul.f32 1.0, %v1035
        %v1037 = vrcp.pop %v921
        %v1038 = vmul.f32 %v921, %v1037
        %v1039 = vsub.f32 1.0, %v1038
        %v1040 = vmul.f32 %v1037, %v1039
        %v1041 = vadd.f32 %v1037, %v1040
        %vm1042 = vweird.f32 %v921
        %vm1043 = vweird.f32 %v1037
        %vm1044 = vmor %vm1042, %vm1043
        %v1045 = vsel %vm1044, %v1037, %v1041
        %v1046 = vand.u32 2147483647, %v921
        %vm1047 = vcmp.eq.f32.partialorder %v1046, 8.507059e+37
        %v1048 = vand.u32 %v921, 2147483648
        %v1049 = vor.u32 1.1754944e-38, %v1048
        %v1050 = vsel %vm1047, %v1049, %v1045
        %v1051 = vmul.f32 1.0, %v1050
        %v1052 = vrcp.pop %v922
        %v1053 = vmul.f32 %v922, %v1052
        %v1054 = vsub.f32 1.0, %v1053
        %v1055 = vmul.f32 %v1052, %v1054
        %v1056 = vadd.f32 %v1052, %v1055
        %vm1057 = vweird.f32 %v922
        %vm1058 = vweird.f32 %v1052
        %vm1059 = vmor %vm1057, %vm1058
        %v1060 = vsel %vm1059, %v1052, %v1056
        %v1061 = vand.u32 2147483647, %v922
        %vm1062 = vcmp.eq.f32.partialorder %v1061, 8.507059e+37
        %v1063 = vand.u32 %v922, 2147483648
        %v1064 = vor.u32 1.1754944e-38, %v1063
        %v1065 = vsel %vm1062, %v1064, %v1060
        %v1066 = vmul.f32 1.0, %v1065
        %v1067 = vrcp.pop %v923
        %v1068 = vmul.f32 %v923, %v1067
        %v1069 = vsub.f32 1.0, %v1068
        %v1070 = vmul.f32 %v1067, %v1069
        %v1071 = vadd.f32 %v1067, %v1070
        %vm1072 = vweird.f32 %v923
        %vm1073 = vweird.f32 %v1067
        %vm1074 = vmor %vm1072, %vm1073
        %v1075 = vsel %vm1074, %v1067, %v1071
        %v1076 = vand.u32 2147483647, %v923
        %vm1077 = vcmp.eq.f32.partialorder %v1076, 8.507059e+37
        %v1078 = vand.u32 %v923, 2147483648
        %v1079 = vor.u32 1.1754944e-38, %v1078
        %v1080 = vsel %vm1077, %v1079, %v1075
        %v1081 = vmul.f32 1.0, %v1080
        %v1082 = vrcp.pop %v924
        %v1083 = vmul.f32 %v924, %v1082
        %v1084 = vsub.f32 1.0, %v1083
        %v1085 = vmul.f32 %v1082, %v1084
        %v1086 = vadd.f32 %v1082, %v1085
        %vm1087 = vweird.f32 %v924
        %vm1088 = vweird.f32 %v1082
        %vm1089 = vmor %vm1087, %vm1088
        %v1090 = vsel %vm1089, %v1082, %v1086
        %v1091 = vand.u32 2147483647, %v924
        %vm1092 = vcmp.eq.f32.partialorder %v1091, 8.507059e+37
        %v1093 = vand.u32 %v924, 2147483648
        %v1094 = vor.u32 1.1754944e-38, %v1093
        %v1095 = vsel %vm1092, %v1094, %v1090
        %v1096 = vmul.f32 1.0, %v1095
        %v1097 = vrcp.pop %v925
        %v1098 = vmul.f32 %v925, %v1097
        %v1099 = vsub.f32 1.0, %v1098
        %v1100 = vmul.f32 %v1097, %v1099
        %v1101 = vadd.f32 %v1097, %v1100
        %vm1102 = vweird.f32 %v925
        %vm1103 = vweird.f32 %v1097
        %vm1104 = vmor %vm1102, %vm1103
        %v1105 = vsel %vm1104, %v1097, %v1101
        %v1106 = vand.u32 2147483647, %v925
        %vm1107 = vcmp.eq.f32.partialorder %v1106, 8.507059e+37
        %v1108 = vand.u32 %v925, 2147483648
        %v1109 = vor.u32 1.1754944e-38, %v1108
        %v1110 = vsel %vm1107, %v1109, %v1105
        %v1111 = vmul.f32 1.0, %v1110
        %v1112 = vrcp.pop %v926
        %v1113 = vmul.f32 %v926, %v1112
        %v1114 = vsub.f32 1.0, %v1113
        %v1115 = vmul.f32 %v1112, %v1114
        %v1116 = vadd.f32 %v1112, %v1115
        %vm1117 = vweird.f32 %v926
        %vm1118 = vweird.f32 %v1112
        %vm1119 = vmor %vm1117, %vm1118
        %v1120 = vsel %vm1119, %v1112, %v1116
        %v1121 = vand.u32 2147483647, %v926
        %vm1122 = vcmp.eq.f32.partialorder %v1121, 8.507059e+37
        %v1123 = vand.u32 %v926, 2147483648
        %v1124 = vor.u32 1.1754944e-38, %v1123
        %v1125 = vsel %vm1122, %v1124, %v1120
        %v1126 = vmul.f32 1.0, %v1125
        %v1127 = vrcp.pop %v927
        %v1128 = vmul.f32 %v927, %v1127
        %v1129 = vsub.f32 1.0, %v1128
        %v1130 = vmul.f32 %v1127, %v1129
        %v1131 = vadd.f32 %v1127, %v1130
        %vm1132 = vweird.f32 %v927
        %vm1133 = vweird.f32 %v1127
        %vm1134 = vmor %vm1132, %vm1133
        %v1135 = vsel %vm1134, %v1127, %v1131
        %v1136 = vand.u32 2147483647, %v927
        %vm1137 = vcmp.eq.f32.partialorder %v1136, 8.507059e+37
        %v1138 = vand.u32 %v927, 2147483648
        %v1139 = vor.u32 1.1754944e-38, %v1138
        %v1140 = vsel %vm1137, %v1139, %v1135
        %v1141 = vmul.f32 1.0, %v1140
        %v1142 = vrcp.pop %v928
        %v1143 = vmul.f32 %v928, %v1142
        %v1144 = vsub.f32 1.0, %v1143
        %v1145 = vmul.f32 %v1142, %v1144
        %v1146 = vadd.f32 %v1142, %v1145
        %vm1147 = vweird.f32 %v928
        %vm1148 = vweird.f32 %v1142
        %vm1149 = vmor %vm1147, %vm1148
        %v1150 = vsel %vm1149, %v1142, %v1146
        %v1151 = vand.u32 2147483647, %v928
        %vm1152 = vcmp.eq.f32.partialorder %v1151, 8.507059e+37
        %v1153 = vand.u32 %v928, 2147483648
        %v1154 = vor.u32 1.1754944e-38, %v1153
        %v1155 = vsel %vm1152, %v1154, %v1150
        %v1156 = vmul.f32 1.0, %v1155
        %v1157 = vrcp.pop %v929
        %v1158 = vmul.f32 %v929, %v1157
        %v1159 = vsub.f32 1.0, %v1158
        %v1160 = vmul.f32 %v1157, %v1159
        %v1161 = vadd.f32 %v1157, %v1160
        %vm1162 = vweird.f32 %v929
        %vm1163 = vweird.f32 %v1157
        %vm1164 = vmor %vm1162, %vm1163
        %v1165 = vsel %vm1164, %v1157, %v1161
        %v1166 = vand.u32 2147483647, %v929
        %vm1167 = vcmp.eq.f32.partialorder %v1166, 8.507059e+37
        %v1168 = vand.u32 %v929, 2147483648
        %v1169 = vor.u32 1.1754944e-38, %v1168
        %v1170 = vsel %vm1167, %v1169, %v1165
        %v1171 = vmul.f32 1.0, %v1170
        %v1172 = vrcp.pop %v930
        %v1173 = vmul.f32 %v930, %v1172
        %v1174 = vsub.f32 1.0, %v1173
        %v1175 = vmul.f32 %v1172, %v1174
        %v1176 = vadd.f32 %v1172, %v1175
        %vm1177 = vweird.f32 %v930
        %vm1178 = vweird.f32 %v1172
        %vm1179 = vmor %vm1177, %vm1178
        %v1180 = vsel %vm1179, %v1172, %v1176
        %v1181 = vand.u32 2147483647, %v930
        %vm1182 = vcmp.eq.f32.partialorder %v1181, 8.507059e+37
        %v1183 = vand.u32 %v930, 2147483648
        %v1184 = vor.u32 1.1754944e-38, %v1183
        %v1185 = vsel %vm1182, %v1184, %v1180
        %v1186 = vmul.f32 1.0, %v1185
        %v1187 = vrcp.pop %v931
        %v1188 = vmul.f32 %v931, %v1187
        %v1189 = vsub.f32 1.0, %v1188
        %v1190 = vmul.f32 %v1187, %v1189
        %v1191 = vadd.f32 %v1187, %v1190
        %vm1192 = vweird.f32 %v931
        %vm1193 = vweird.f32 %v1187
        %vm1194 = vmor %vm1192, %vm1193
        %v1195 = vsel %vm1194, %v1187, %v1191
        %v1196 = vand.u32 2147483647, %v931
        %vm1197 = vcmp.eq.f32.partialorder %v1196, 8.507059e+37
        %v1198 = vand.u32 %v931, 2147483648
        %v1199 = vor.u32 1.1754944e-38, %v1198
        %v1200 = vsel %vm1197, %v1199, %v1195
        %v1201 = vmul.f32 1.0, %v1200
        %v1202 = vrcp.pop %v932
        %v1203 = vmul.f32 %v932, %v1202
        %v1204 = vsub.f32 1.0, %v1203
        %v1205 = vmul.f32 %v1202, %v1204
        %v1206 = vadd.f32 %v1202, %v1205
        %vm1207 = vweird.f32 %v932
        %vm1208 = vweird.f32 %v1202
        %vm1209 = vmor %vm1207, %vm1208
        %v1210 = vsel %vm1209, %v1202, %v1206
        %v1211 = vand.u32 2147483647, %v932
        %vm1212 = vcmp.eq.f32.partialorder %v1211, 8.507059e+37
        %v1213 = vand.u32 %v932, 2147483648
        %v1214 = vor.u32 1.1754944e-38, %v1213
        %v1215 = vsel %vm1212, %v1214, %v1210
        %v1216 = vmul.f32 1.0, %v1215
        %v1217 = vrcp.pop %v933
        %v1218 = vmul.f32 %v933, %v1217
        %v1219 = vsub.f32 1.0, %v1218
        %v1220 = vmul.f32 %v1217, %v1219
        %v1221 = vadd.f32 %v1217, %v1220
        %vm1222 = vweird.f32 %v933
        %vm1223 = vweird.f32 %v1217
        %vm1224 = vmor %vm1222, %vm1223
        %v1225 = vsel %vm1224, %v1217, %v1221
        %v1226 = vand.u32 2147483647, %v933
        %vm1227 = vcmp.eq.f32.partialorder %v1226, 8.507059e+37
        %v1228 = vand.u32 %v933, 2147483648
        %v1229 = vor.u32 1.1754944e-38, %v1228
        %v1230 = vsel %vm1227, %v1229, %v1225
        %v1231 = vmul.f32 1.0, %v1230
        %v1232 = vrcp.pop %v934
        %v1233 = vmul.f32 %v934, %v1232
        %v1234 = vsub.f32 1.0, %v1233
        %v1235 = vmul.f32 %v1232, %v1234
        %v1236 = vadd.f32 %v1232, %v1235
        %vm1237 = vweird.f32 %v934
        %vm1238 = vweird.f32 %v1232
        %vm1239 = vmor %vm1237, %vm1238
        %v1240 = vsel %vm1239, %v1232, %v1236
        %v1241 = vand.u32 2147483647, %v934
        %vm1242 = vcmp.eq.f32.partialorder %v1241, 8.507059e+37
        %v1243 = vand.u32 %v934, 2147483648
        %v1244 = vor.u32 1.1754944e-38, %v1243
        %v1245 = vsel %vm1242, %v1244, %v1240
        %v1246 = vmul.f32 1.0, %v1245
        %v1247 = vrcp.pop %v935
        %v1248 = vmul.f32 %v935, %v1247
        %v1249 = vsub.f32 1.0, %v1248
        %v1250 = vmul.f32 %v1247, %v1249
        %v1251 = vadd.f32 %v1247, %v1250
        %vm1252 = vweird.f32 %v935
        %vm1253 = vweird.f32 %v1247
        %vm1254 = vmor %vm1252, %vm1253
        %v1255 = vsel %vm1254, %v1247, %v1251
        %v1256 = vand.u32 2147483647, %v935
        %vm1257 = vcmp.eq.f32.partialorder %v1256, 8.507059e+37
        %v1258 = vand.u32 %v935, 2147483648
        %v1259 = vor.u32 1.1754944e-38, %v1258
        %v1260 = vsel %vm1257, %v1259, %v1255
        %v1261 = vmul.f32 1.0, %v1260
        %v1262 = vrcp.pop %v936
        %v1263 = vmul.f32 %v936, %v1262
        %v1264 = vsub.f32 1.0, %v1263
        %v1265 = vmul.f32 %v1262, %v1264
        %v1266 = vadd.f32 %v1262, %v1265
        %vm1267 = vweird.f32 %v936
        %vm1268 = vweird.f32 %v1262
        %vm1269 = vmor %vm1267, %vm1268
        %v1270 = vsel %vm1269, %v1262, %v1266
        %v1271 = vand.u32 2147483647, %v936
        %vm1272 = vcmp.eq.f32.partialorder %v1271, 8.507059e+37
        %v1273 = vand.u32 %v936, 2147483648
        %v1274 = vor.u32 1.1754944e-38, %v1273
        %v1275 = vsel %vm1272, %v1274, %v1270
        %v1276 = vmul.f32 1.0, %v1275
        %v1277 = vrcp.pop %v937
        %v1278 = vmul.f32 %v937, %v1277
        %v1279 = vsub.f32 1.0, %v1278
        %v1280 = vmul.f32 %v1277, %v1279
        %v1281 = vadd.f32 %v1277, %v1280
        %vm1282 = vweird.f32 %v937
        %vm1283 = vweird.f32 %v1277
        %vm1284 = vmor %vm1282, %vm1283
        %v1285 = vsel %vm1284, %v1277, %v1281
        %v1286 = vand.u32 2147483647, %v937
        %vm1287 = vcmp.eq.f32.partialorder %v1286, 8.507059e+37
        %v1288 = vand.u32 %v937, 2147483648
        %v1289 = vor.u32 1.1754944e-38, %v1288
        %v1290 = vsel %vm1287, %v1289, %v1285
        %v1291 = vmul.f32 1.0, %v1290
        %v1292 = vrcp.pop %v938
        %v1293 = vmul.f32 %v938, %v1292
        %v1294 = vsub.f32 1.0, %v1293
        %v1295 = vmul.f32 %v1292, %v1294
        %v1296 = vadd.f32 %v1292, %v1295
        %vm1297 = vweird.f32 %v938
        %vm1298 = vweird.f32 %v1292
        %vm1299 = vmor %vm1297, %vm1298
        %v1300 = vsel %vm1299, %v1292, %v1296
        %v1301 = vand.u32 2147483647, %v938
        %vm1302 = vcmp.eq.f32.partialorder %v1301, 8.507059e+37
        %v1303 = vand.u32 %v938, 2147483648
        %v1304 = vor.u32 1.1754944e-38, %v1303
        %v1305 = vsel %vm1302, %v1304, %v1300
        %v1306 = vmul.f32 1.0, %v1305
        %v1307 = vrcp.pop %v939
        %v1308 = vmul.f32 %v939, %v1307
        %v1309 = vsub.f32 1.0, %v1308
        %v1310 = vmul.f32 %v1307, %v1309
        %v1311 = vadd.f32 %v1307, %v1310
        %vm1312 = vweird.f32 %v939
        %vm1313 = vweird.f32 %v1307
        %vm1314 = vmor %vm1312, %vm1313
        %v1315 = vsel %vm1314, %v1307, %v1311
        %v1316 = vand.u32 2147483647, %v939
        %vm1317 = vcmp.eq.f32.partialorder %v1316, 8.507059e+37
        %v1318 = vand.u32 %v939, 2147483648
        %v1319 = vor.u32 1.1754944e-38, %v1318
        %v1320 = vsel %vm1317, %v1319, %v1315
        %v1321 = vmul.f32 1.0, %v1320
        %v1322 = vrcp.pop %v940
        %v1323 = vmul.f32 %v940, %v1322
        %v1324 = vsub.f32 1.0, %v1323
        %v1325 = vmul.f32 %v1322, %v1324
        %v1326 = vadd.f32 %v1322, %v1325
        %vm1327 = vweird.f32 %v940
        %vm1328 = vweird.f32 %v1322
        %vm1329 = vmor %vm1327, %vm1328
        %v1330 = vsel %vm1329, %v1322, %v1326
        %v1331 = vand.u32 2147483647, %v940
        %vm1332 = vcmp.eq.f32.partialorder %v1331, 8.507059e+37
        %v1333 = vand.u32 %v940, 2147483648
        %v1334 = vor.u32 1.1754944e-38, %v1333
        %v1335 = vsel %vm1332, %v1334, %v1330
        %v1336 = vmul.f32 1.0, %v1335
        %v1337 = vrcp.pop %v941
        %v1338 = vmul.f32 %v941, %v1337
        %v1339 = vsub.f32 1.0, %v1338
        %v1340 = vmul.f32 %v1337, %v1339
        %v1341 = vadd.f32 %v1337, %v1340
        %vm1342 = vweird.f32 %v941
        %vm1343 = vweird.f32 %v1337
        %vm1344 = vmor %vm1342, %vm1343
        %v1345 = vsel %vm1344, %v1337, %v1341
        %v1346 = vand.u32 2147483647, %v941
        %vm1347 = vcmp.eq.f32.partialorder %v1346, 8.507059e+37
        %v1348 = vand.u32 %v941, 2147483648
        %v1349 = vor.u32 1.1754944e-38, %v1348
        %v1350 = vsel %vm1347, %v1349, %v1345
        %v1351 = vmul.f32 1.0, %v1350
        %v1352 = vrcp.pop %v942
        %v1353 = vmul.f32 %v942, %v1352
        %v1354 = vsub.f32 1.0, %v1353
        %v1355 = vmul.f32 %v1352, %v1354
        %v1356 = vadd.f32 %v1352, %v1355
        %vm1357 = vweird.f32 %v942
        %vm1358 = vweird.f32 %v1352
        %vm1359 = vmor %vm1357, %vm1358
        %v1360 = vsel %vm1359, %v1352, %v1356
        %v1361 = vand.u32 2147483647, %v942
        %vm1362 = vcmp.eq.f32.partialorder %v1361, 8.507059e+37
        %v1363 = vand.u32 %v942, 2147483648
        %v1364 = vor.u32 1.1754944e-38, %v1363
        %v1365 = vsel %vm1362, %v1364, %v1360
        %v1366 = vmul.f32 1.0, %v1365
        %v1367 = vrcp.pop %v943
        %v1368 = vmul.f32 %v943, %v1367
        %v1369 = vsub.f32 1.0, %v1368
        %v1370 = vmul.f32 %v1367, %v1369
        %v1371 = vadd.f32 %v1367, %v1370
        %vm1372 = vweird.f32 %v943
        %vm1373 = vweird.f32 %v1367
        %vm1374 = vmor %vm1372, %vm1373
        %v1375 = vsel %vm1374, %v1367, %v1371
        %v1376 = vand.u32 2147483647, %v943
        %vm1377 = vcmp.eq.f32.partialorder %v1376, 8.507059e+37
        %v1378 = vand.u32 %v943, 2147483648
        %v1379 = vor.u32 1.1754944e-38, %v1378
        %v1380 = vsel %vm1377, %v1379, %v1375
        %v1381 = vmul.f32 1.0, %v1380
        %v1382 = vrcp.pop %v944
        %v1383 = vmul.f32 %v944, %v1382
        %v1384 = vsub.f32 1.0, %v1383
        %v1385 = vmul.f32 %v1382, %v1384
        %v1386 = vadd.f32 %v1382, %v1385
        %vm1387 = vweird.f32 %v944
        %vm1388 = vweird.f32 %v1382
        %vm1389 = vmor %vm1387, %vm1388
        %v1390 = vsel %vm1389, %v1382, %v1386
        %v1391 = vand.u32 2147483647, %v944
        %vm1392 = vcmp.eq.f32.partialorder %v1391, 8.507059e+37
        %v1393 = vand.u32 %v944, 2147483648
        %v1394 = vor.u32 1.1754944e-38, %v1393
        %v1395 = vsel %vm1392, %v1394, %v1390
        %v1396 = vmul.f32 1.0, %v1395
        %v1397 = vrcp.pop %v945
        %v1398 = vmul.f32 %v945, %v1397
        %v1399 = vsub.f32 1.0, %v1398
        %v1400 = vmul.f32 %v1397, %v1399
        %v1401 = vadd.f32 %v1397, %v1400
        %vm1402 = vweird.f32 %v945
        %vm1403 = vweird.f32 %v1397
        %vm1404 = vmor %vm1402, %vm1403
        %v1405 = vsel %vm1404, %v1397, %v1401
        %v1406 = vand.u32 2147483647, %v945
        %vm1407 = vcmp.eq.f32.partialorder %v1406, 8.507059e+37
        %v1408 = vand.u32 %v945, 2147483648
        %v1409 = vor.u32 1.1754944e-38, %v1408
        %v1410 = vsel %vm1407, %v1409, %v1405
        %v1411 = vmul.f32 1.0, %v1410
        %v1412 = vrcp.pop %v946
        %v1413 = vmul.f32 %v946, %v1412
        %v1414 = vsub.f32 1.0, %v1413
        %v1415 = vmul.f32 %v1412, %v1414
        %v1416 = vadd.f32 %v1412, %v1415
        %vm1417 = vweird.f32 %v946
        %vm1418 = vweird.f32 %v1412
        %vm1419 = vmor %vm1417, %vm1418
        %v1420 = vsel %vm1419, %v1412, %v1416
        %v1421 = vand.u32 2147483647, %v946
        %vm1422 = vcmp.eq.f32.partialorder %v1421, 8.507059e+37
        %v1423 = vand.u32 %v946, 2147483648
        %v1424 = vor.u32 1.1754944e-38, %v1423
        %v1425 = vsel %vm1422, %v1424, %v1420
        %v1426 = vmul.f32 1.0, %v1425
        %v1427 = vmul.f32 %v787, %v961
        %v1428 = vmul.f32 %v788, %v976
        %v1429 = vmul.f32 %v789, %v991
        %v1430 = vmul.f32 %v790, %v1006
        %v1431 = vmul.f32 %v791, %v1021
        %v1432 = vmul.f32 %v792, %v1036
        %v1433 = vmul.f32 %v793, %v1051
        %v1434 = vmul.f32 %v794, %v1066
        %v1435 = vmul.f32 %v795, %v1081
        %v1436 = vmul.f32 %v796, %v1096
        %v1437 = vmul.f32 %v797, %v1111
        %v1438 = vmul.f32 %v798, %v1126
        %v1439 = vmul.f32 %v799, %v1141
        %v1440 = vmul.f32 %v800, %v1156
        %v1441 = vmul.f32 %v801, %v1171
        %v1442 = vmul.f32 %v802, %v1186
        %v1443 = vmul.f32 %v803, %v1201
        %v1444 = vmul.f32 %v804, %v1216
        %v1445 = vmul.f32 %v805, %v1231
        %v1446 = vmul.f32 %v806, %v1246
        %v1447 = vmul.f32 %v807, %v1261
        %v1448 = vmul.f32 %v808, %v1276
        %v1449 = vmul.f32 %v809, %v1291
        %v1450 = vmul.f32 %v810, %v1306
        %v1451 = vmul.f32 %v811, %v1321
        %v1452 = vmul.f32 %v812, %v1336
        %v1453 = vmul.f32 %v813, %v1351
        %v1454 = vmul.f32 %v814, %v1366
        %v1455 = vmul.f32 %v815, %v1381
        %v1456 = vmul.f32 %v816, %v1396
        %v1457 = vmul.f32 %v817, %v1411
        %v1458 = vmul.f32 %v818, %v1426
        %1459 = vst [vmem:[%s217] sm:$0xff] %v1427
        %1460 = vst [vmem:[%s217 + $0x8] sm:$0xff] %v1428
        %1461 = vst [vmem:[%s217 + $0x10] sm:$0xff] %v1429
        %1462 = vst [vmem:[%s217 + $0x18] sm:$0xff] %v1430
        %1463 = vst [vmem:[%s217 + $0x20] sm:$0xff] %v1431
        %1464 = vst [vmem:[%s217 + $0x28] sm:$0xff] %v1432
        %1465 = vst [vmem:[%s217 + $0x30] sm:$0xff] %v1433
        %1466 = vst [vmem:[%s217 + $0x38] sm:$0xff] %v1434
        %1467 = vst [vmem:[%s217 + $0x40] sm:$0xff] %v1435
        %1468 = vst [vmem:[%s217 + $0x48] sm:$0xff] %v1436
        %1469 = vst [vmem:[%s217 + $0x50] sm:$0xff] %v1437
        %1470 = vst [vmem:[%s217 + $0x58] sm:$0xff] %v1438
        %1471 = vst [vmem:[%s217 + $0x60] sm:$0xff] %v1439
        %1472 = vst [vmem:[%s217 + $0x68] sm:$0xff] %v1440
        %1473 = vst [vmem:[%s217 + $0x70] sm:$0xff] %v1441
        %1474 = vst [vmem:[%s217 + $0x78] sm:$0xff] %v1442
        %1475 = vst [vmem:[%s217 + $0x80] sm:$0xff] %v1443
        %1476 = vst [vmem:[%s217 + $0x88] sm:$0xff] %v1444
        %1477 = vst [vmem:[%s217 + $0x90] sm:$0xff] %v1445
        %1478 = vst [vmem:[%s217 + $0x98] sm:$0xff] %v1446
        %1479 = vst [vmem:[%s217 + $0xa0] sm:$0xff] %v1447
        %1480 = vst [vmem:[%s217 + $0xa8] sm:$0xff] %v1448
        %1481 = vst [vmem:[%s217 + $0xb0] sm:$0xff] %v1449
        %1482 = vst [vmem:[%s217 + $0xb8] sm:$0xff] %v1450
        %1483 = vst [vmem:[%s217 + $0xc0] sm:$0xff] %v1451
        %1484 = vst [vmem:[%s217 + $0xc8] sm:$0xff] %v1452
        %1485 = vst [vmem:[%s217 + $0xd0] sm:$0xff] %v1453
        %1486 = vst [vmem:[%s217 + $0xd8] sm:$0xff] %v1454
        %1487 = vst [vmem:[%s217 + $0xe0] sm:$0xff] %v1455
        %1488 = vst [vmem:[%s217 + $0xe8] sm:$0xff] %v1456
        %1489 = vst [vmem:[%s217 + $0xf0] sm:$0xff] %v1457
        %1490 = vst [vmem:[%s217 + $0xf8] sm:$0xff] %v1458
        %s1491 = sand.u32 %s137, 1
        %s1492 = scalar_lea.sflag [#allocation3], %s1491
        %s1493 = sand.u32 %s137, 1
        %s1494 = smul.addr %s1493, 256
        %s1495 = scalar_lea.vmem [#allocation2], %s1494
        // Predicated region
        $region41: #{tpu_custom_call.1} parent=39 // pred_check
          %p1496 = pneg %p147
        $region42: #{tpu_custom_call.1} parent=39 // pred_check_branch
          %1498 = sbr.rel (%p1496) target = $region44
        $region43: #{tpu_custom_call.1} parent=39 // pred_region
          %1500 = vsyncadd %s1492, 0
          %s1501 = smul.addr %s19, 32
          %s1502 = smul.addr %s1501, 8
          %s1503 = scalar_lea.hbm %s5, %s1502
          %s1504 = sshll.u32 %s1495, 4
          %s1505 = int_to_ptr.vmem [resolvable:$true] %s1504
          %s1506 = sshll.u32 %s1503, 4
          %s1507 = int_to_ptr.hbm [resolvable:$true] %s1506
          %1512 = dma.vmem_to_hbm [thread:$0]  %s1505, 4096, %s1507, %s1492, 128, 128, 8
        $region44: #{tpu_custom_call.1} parent=39 // pred_fallthru
          _
      $region40: #{tpu_custom_call.1} parent=5 // pred_fallthru
        _
      %p1513 = scmp.le.s32.totalorder 2, %s14
      // Predicated region
      $region45: #{tpu_custom_call.1} parent=5 // pred_check
        %p1514 = pneg %p1513
      $region46: #{tpu_custom_call.1} parent=5 // pred_check_branch
        %1516 = sbr.rel (%p1514) target = $region48
      $region47: #{tpu_custom_call.1} parent=5 // pred_region
        %s1517 = ssub.s32 %s14, 2
        // Predicated region
        $region49: #{tpu_custom_call.1} parent=47 // pred_check
          %p1518 = pneg %p153
        $region50: #{tpu_custom_call.1} parent=47 // pred_check_branch
          %1520 = sbr.rel (%p1518) target = $region52
        $region51: #{tpu_custom_call.1} parent=47 // pred_region
          %s1521 = sand.u32 %s138, 1
          %s1522 = scalar_lea.sflag [#allocation3], %s1521
          %s1523 = sand.u32 %s138, 1
          %s1524 = smul.addr %s1523, 256
          %s1525 = scalar_lea.vmem [#allocation2], %s1524
          %1527 = dma.done %s1522, 4096
        $region52: #{tpu_custom_call.1} parent=47 // pred_fallthru
          _
      $region48: #{tpu_custom_call.1} parent=5 // pred_fallthru
        _
    $region6: #{tpu_custom_call.1} parent=1 // loop_footer
      %s18 = sadd.s32 1, %s14
    $region7: #{tpu_custom_call.1} parent=1 // loop_footer_branch
      %13 = sbr.rel target = $region3
    $region8: #{tpu_custom_call.1} parent=1 // loop_exit
      _
    %1528 = vsyncpa [#allocation3], 1
    %s1529 = scalar_lea.sflag [#allocation3], 1
    %1530 = vsyncpa %s1529, 1

</llo_original>
